<compile_context>
chip_gen: v7x
topology: tpu7x:2x2x1
jax: 0.10.0
libtpu: 0.0.40
codegen_flags: <defaults>
</compile_context>

<pallas_src>
import numpy as np
import jax
import jax.numpy as jnp
from jax.experimental import pallas as pl
from jax.experimental.pallas import tpu as pltpu

NUM_CHANNELS = 2          # const.NUM_CHANNELS
SEQ_LEN = 2048            # forced by Linear(32, 8) after six stride-2 convs
BATCH = 2
BN_EPS = 1e-5
LANES = 128

# (cin, cout, Lin) for the six stride-2, kernel-3, pad-1 conv blocks.
CONV_CFG = [
    (NUM_CHANNELS, 4, SEQ_LEN),
    (4, 4, SEQ_LEN // 2),
    (4, 2, SEQ_LEN // 4),
    (2, 2, SEQ_LEN // 8),
    (2, 1, SEQ_LEN // 16),
    (1, 1, SEQ_LEN // 32),
]

# Static offsets into the flattened conv-weight / conv-bias SMEM arrays.
W_OFFS, B_OFFS = [], []
_w, _b = 0, 0
for (_cin, _cout, _L) in CONV_CFG:
    W_OFFS.append(_w)
    B_OFFS.append(_b)
    _w += _cout * _cin * 3
    _b += _cout
CONV_W_SIZE, CONV_B_SIZE = _w, _b


# ----------------------------------------------------------------------------
# Kernel
# ----------------------------------------------------------------------------
def tiniernet_kernel(x_ref, cw_ref, cb_ref, fc0_ref, fc1_ref, fc2_ref, fcb_ref,
                     out_ref):
    # x_ref: (C, 16, 128) segmented layout for one batch element:
    #        element (c, s, l) = x[c, l*16 + s]   (time = lane*S + sublane).
    lane = jax.lax.broadcasted_iota(jnp.int32, (1, LANES), 1)

    def wrap_row(last_odd_row):
        # last_odd_row[0, l] = x[l*S + (S-1)]  ->  want x[l*S - 1]:
        #   l >= 1 : last_odd_row[0, l-1];   l == 0 : 0 (left zero-pad).
        rolled = pltpu.roll(last_odd_row, shift=1, axis=1)
        return jnp.where(lane == 0, 0.0, rolled)

    def make_prev(odd, sout):
        w = wrap_row(odd[sout - 1:sout, :])
        if sout == 1:
            return w
        return jnp.concatenate([w, odd[:sout - 1, :]], axis=0)

    def deinterleave(plane, sout):
        # plane: (2*sout, 128) value -> even rows, odd rows (each (sout, 128)).
        if sout == 1:
            return plane[0:1, :], plane[1:2, :]
        even = jnp.concatenate(
            [plane[2 * j:2 * j + 1, :] for j in range(sout)], axis=0)
        odd = jnp.concatenate(
            [plane[2 * j + 1:2 * j + 2, :] for j in range(sout)], axis=0)
        return even, odd

    def conv_bn_relu(taps, li):
        """taps[ci] = (prev, even, odd) planes of shape (sout, 128)."""
        cin, cout, _lin = CONV_CFG[li]
        w_off, b_off = W_OFFS[li], B_OFFS[li]
        outs = []
        for co in range(cout):
            acc = None
            for ci in range(cin):
                base = w_off + (co * cin + ci) * 3
                prev, even, odd = taps[ci]
                term = (cw_ref[base + 0] * prev + cw_ref[base + 1] * even
                        + cw_ref[base + 2] * odd)
                acc = term if acc is None else acc + term
            outs.append(jnp.maximum(acc + cb_ref[b_off + co], 0.0))
        return outs

    # ---- layer 0: strided sublane reads straight from the input ref ---------
    sout = (CONV_CFG[0][2] // LANES) // 2          # 8
    taps = []
    for ci in range(CONV_CFG[0][0]):
        xc = x_ref.at[ci]                          # (16, 128) view
        even = xc[pl.ds(0, sout, stride=2), :]     # x[2t]
        odd = xc[pl.ds(1, sout, stride=2), :]      # x[2t+1]
        taps.append((make_prev(odd, sout), even, odd))
    act = conv_bn_relu(taps, 0)                    # 4 x (8, 128)

    # ---- layers 1..3: value planes, static row de-interleave -----------------
    for li in (1, 2, 3):
        sout = (CONV_CFG[li][2] // LANES) // 2
        taps = []
        for plane in act:
            even, odd = deinterleave(plane, sout)
            taps.append((make_prev(odd, sout), even, odd))
        act = conv_bn_relu(taps, li)
    # act: 2 x (1, 128) rows, time directly on lanes (L = 128).

    # ---- layer 4 (dilated in-register; valid samples at lanes 2u) ------------
    w_off, b_off = W_OFFS[4], B_OFFS[4]
    acc = None
    for ci in range(CONV_CFG[4][0]):
        r = act[ci]
        left = jnp.where(lane == 0, 0.0, pltpu.roll(r, shift=1, axis=1))
        right = pltpu.roll(r, shift=LANES - 1, axis=1)         # x[l+1]
        base = w_off + ci * 3
        term = (cw_ref[base + 0] * left + cw_ref[base + 1] * r
                + cw_ref[base + 2] * right)
        acc = term if acc is None else acc + term
    z4 = jnp.maximum(acc + cb_ref[b_off], 0.0)                  # (1, 128)

    # ---- layer 5 (dilated; valid samples at lanes 4v) -------------------------
    w_off, b_off = W_OFFS[5], B_OFFS[5]
    left2 = jnp.where(lane < 2, 0.0, pltpu.roll(z4, shift=2, axis=1))
    right2 = pltpu.roll(z4, shift=LANES - 2, axis=1)            # z4[l+2]
    z5 = jnp.maximum(cw_ref[w_off + 0] * left2 + cw_ref[w_off + 1] * z4
                     + cw_ref[w_off + 2] * right2 + cb_ref[b_off], 0.0)

    # ---- FC head: fc0 columns were pre-scattered onto the stride-4 lanes ------
    h = jnp.dot(z5, fc0_ref[...], preferred_element_type=jnp.float32)   # (1, 8)
    h = jnp.maximum(h + fcb_ref[0:1, :], 0.0)
    h = jnp.dot(h, fc1_ref[...], preferred_element_type=jnp.float32)    # (1, 8)
    h = jnp.maximum(h + fcb_ref[1:2, :], 0.0)
    y = jnp.dot(h, fc2_ref[...], preferred_element_type=jnp.float32)    # (1, 1)

    # Dense (lane-full) output block; wrapper slices element [0, 0].
    out_ref[...] = jnp.broadcast_to(y.reshape(1, 1, 1), out_ref.shape)


# ----------------------------------------------------------------------------
# Wrapper
# ----------------------------------------------------------------------------
def tiniernet_forward(x_ncl, conv_w, conv_b, fc0_t, fc1_t, fc2_t, fcb):
    B, C, L = x_ncl.shape
    s0 = L // LANES                                    # 16
    # Segmented lane-dense layout: (b, c, s, l) = x[b, c, l*s0 + s].
    x_seg = jnp.swapaxes(x_ncl.astype(jnp.float32).reshape(B, C, LANES, s0), 2, 3)
    x_seg = x_seg.reshape(B * C, s0, LANES)

    out = pl.pallas_call(
        tiniernet_kernel,
        out_shape=jax.ShapeDtypeStruct((B, 8, LANES), jnp.float32),
        grid=(B,),
        in_specs=[
            pl.BlockSpec((C, s0, LANES), lambda b: (b, 0, 0)),          # x (seg)
            pl.BlockSpec(memory_space=pltpu.MemorySpace.SMEM),          # conv w
            pl.BlockSpec(memory_space=pltpu.MemorySpace.SMEM),          # conv b
            pl.BlockSpec((LANES, 8), lambda b: (0, 0)),                 # fc0 scat^T
            pl.BlockSpec((8, 8), lambda b: (0, 0)),                     # fc1^T
            pl.BlockSpec((8, 1), lambda b: (0, 0)),                     # fc2^T
            pl.BlockSpec((2, 8), lambda b: (0, 0)),                     # fc shifts
        ],
        out_specs=pl.BlockSpec((1, 8, LANES), lambda b: (b, 0, 0)),
        compiler_params=pltpu.CompilerParams(
            dimension_semantics=("parallel",)),
    )(x_seg, conv_w, conv_b, fc0_t, fc1_t, fc2_t, fcb)
    return out[:, 0, :1]                               # (B, 1)


# ----------------------------------------------------------------------------
# Deterministic parameter construction + BN folding (plain JAX glue)
# ----------------------------------------------------------------------------
def init_params(key):
    keys = iter(jax.random.split(key, 64))
    p = {"conv_w": [], "conv_g": [], "conv_bb": [], "conv_m": [], "conv_v": []}
    for (cin, cout, _L) in CONV_CFG:
        p["conv_w"].append(0.3 * jax.random.normal(next(keys), (cout, cin, 3), jnp.float32))
        p["conv_g"].append(1.0 + 0.1 * jax.random.normal(next(keys), (cout,), jnp.float32))
        p["conv_bb"].append(0.1 * jax.random.normal(next(keys), (cout,), jnp.float32))
        p["conv_m"].append(0.1 * jax.random.normal(next(keys), (cout,), jnp.float32))
        p["conv_v"].append(0.5 + jax.random.uniform(next(keys), (cout,), jnp.float32))
    p["fc0_w"] = 0.2 * jax.random.normal(next(keys), (8, 32), jnp.float32)
    p["fc1_w"] = 0.2 * jax.random.normal(next(keys), (8, 8), jnp.float32)
    p["fc2_w"] = 0.2 * jax.random.normal(next(keys), (1, 8), jnp.float32)
    for name in ("fc0", "fc1"):
        p[f"{name}_g"] = 1.0 + 0.1 * jax.random.normal(next(keys), (8,), jnp.float32)
        p[f"{name}_bb"] = 0.1 * jax.random.normal(next(keys), (8,), jnp.float32)
        p[f"{name}_m"] = 0.1 * jax.random.normal(next(keys), (8,), jnp.float32)
        p[f"{name}_v"] = 0.5 + jax.random.uniform(next(keys), (8,), jnp.float32)
    return p


def fuse_params(p):
    cw, cb = [], []
    for w, g, bb, m, v in zip(p["conv_w"], p["conv_g"], p["conv_bb"],
                              p["conv_m"], p["conv_v"]):
        scale = g / jnp.sqrt(v + BN_EPS)
        cw.append((w * scale[:, None, None]).reshape(-1))
        cb.append(bb - m * scale)
    conv_w = jnp.concatenate(cw)                      # (117,)
    conv_b = jnp.concatenate(cb)                      # (14,)

    s0 = p["fc0_g"] / jnp.sqrt(p["fc0_v"] + BN_EPS)
    s1 = p["fc1_g"] / jnp.sqrt(p["fc1_v"] + BN_EPS)
    fc0f = p["fc0_w"] * s0[:, None]                   # (8, 32) BN-scaled
    fc1f = p["fc1_w"] * s1[:, None]                   # (8, 8)  BN-scaled
    # Kernel feature vector lives on lanes 0, 4, 8, ..., 124 of a (1,128) row.
    fc0_scat = jnp.zeros((8, LANES), jnp.float32).at[:, 0::4].set(fc0f)
    fc0_t = fc0_scat.T                                # (128, 8)
    fc1_t = fc1f.T                                    # (8, 8)
    fc2_t = p["fc2_w"].T                              # (8, 1)
    fcb = jnp.stack([p["fc0_bb"] - p["fc0_m"] * s0,
                     p["fc1_bb"] - p["fc1_m"] * s1], axis=0)   # (2, 8)
    return conv_w, conv_b, fc0_t, fc1_t, fc2_t, fcb


# ----------------------------------------------------------------------------
# Pure numpy reference (uses the raw, un-fused parameters)
# ----------------------------------------------------------------------------
def reference_forward(x, p):
    pn = jax.tree_util.tree_map(lambda a: np.asarray(a, np.float64), p)
    act = np.asarray(x, np.float64)
    for w, g, bb, m, v in zip(pn["conv_w"], pn["conv_g"], pn["conv_bb"],
                              pn["conv_m"], pn["conv_v"]):
        outs = []
        lout = act.shape[2] // 2
        for b in range(act.shape[0]):
            xb = np.pad(act[b], ((0, 0), (1, 1)))
            y = np.zeros((w.shape[0], lout))
            for k in range(3):
                y += w[:, :, k] @ xb[:, k:k + 2 * lout:2]
            y = g[:, None] * (y - m[:, None]) / np.sqrt(v[:, None] + BN_EPS) + bb[:, None]
            outs.append(np.maximum(y, 0.0))
        act = np.stack(outs)
    feat = act.reshape(act.shape[0], -1)                    # (B, 32)
    for name in ("fc0", "fc1"):
        feat = feat @ pn[f"{name}_w"].T
        feat = (pn[f"{name}_g"] * (feat - pn[f"{name}_m"])
                / np.sqrt(pn[f"{name}_v"] + BN_EPS) + pn[f"{name}_bb"])
        feat = np.maximum(feat, 0.0)
    return feat @ pn["fc2_w"].T                             # (B, 1)


if __name__ == "__main__":
    key = jax.random.PRNGKey(0)
    k_x, k_p = jax.random.split(key)
    x = jax.random.normal(k_x, (BATCH, NUM_CHANNELS, SEQ_LEN), jnp.float32)

    params = init_params(k_p)
    fused = fuse_params(params)

    fwd = jax.jit(tiniernet_forward)
    out = jax.block_until_ready(fwd(x, *fused))

    ref = reference_forward(np.asarray(x), params)
    np.testing.assert_allclose(np.asarray(out), ref, rtol=2e-2, atol=2e-2)
    print("KERNEL_OK")
</pallas_src>

<mosaic_0001>
module attributes {stable_mosaic.version = 11 : i64} {
  func.func @tiniernet_kernel(%arg0: i32, %arg1: memref<2x16x128xf32, #tpu.memory_space<vmem>>, %arg2: memref<117xf32, #tpu.memory_space<smem>>, %arg3: memref<14xf32, #tpu.memory_space<smem>>, %arg4: memref<128x8xf32, #tpu.memory_space<vmem>>, %arg5: memref<8x8xf32, #tpu.memory_space<vmem>>, %arg6: memref<8x1xf32, #tpu.memory_space<vmem>>, %arg7: memref<2x8xf32, #tpu.memory_space<vmem>>, %arg8: memref<1x8x128xf32, #tpu.memory_space<vmem>>) attributes {dimension_semantics = [#tpu.dimension_semantics<parallel>], iteration_bounds = array<i64: 2>, scalar_prefetch = 0 : i64, scratch_operands = 0 : i64, tpu.core_type = #tpu.core_type<tc>, window_params = [{transform_indices = @transform_0, window_bounds = array<i64: 2, 16, 128>}, {transform_indices = @transform_1, window_bounds = array<i64: 117>}, {transform_indices = @transform_2, window_bounds = array<i64: 14>}, {pipeline_mode = #tpu.pipeline_mode<synchronous>, transform_indices = @transform_3, window_bounds = array<i64: 128, 8>}, {pipeline_mode = #tpu.pipeline_mode<synchronous>, transform_indices = @transform_4, window_bounds = array<i64: 8, 8>}, {pipeline_mode = #tpu.pipeline_mode<synchronous>, transform_indices = @transform_5, window_bounds = array<i64: 8, 1>}, {pipeline_mode = #tpu.pipeline_mode<synchronous>, transform_indices = @transform_6, window_bounds = array<i64: 2, 8>}, {transform_indices = @transform_7, window_bounds = array<i64: 1, 8, 128>}]} {
    %0 = tpu.iota {dimensions = array<i32: 1>} : vector<1x128xi32>
    %c0_i32 = arith.constant 0 : i32
    %c0_i32_0 = arith.constant 0 : i32
    %c0_i32_1 = arith.constant 0 : i32
    %1 = tpu.memref_slice %arg1[%c0_i32, %c0_i32_0, %c0_i32_1] : memref<2x16x128xf32, #tpu.memory_space<vmem>> -> memref<1x16x128xf32, #tpu.memory_space<vmem>>
    %2 = tpu.memref_squeeze %1 : memref<1x16x128xf32, #tpu.memory_space<vmem>> -> memref<16x128xf32, #tpu.memory_space<vmem>>
    %c0 = arith.constant 0 : index
    %c0_2 = arith.constant 0 : index
    %3 = tpu.strided_load %2[%c0, %c0_2] {strides = array<i32: 2, 1>} : memref<16x128xf32, #tpu.memory_space<vmem>>, vector<8x128xf32>
    %c0_i32_3 = arith.constant 0 : i32
    %c0_i32_4 = arith.constant 0 : i32
    %c0_i32_5 = arith.constant 0 : i32
    %4 = tpu.memref_slice %arg1[%c0_i32_3, %c0_i32_4, %c0_i32_5] : memref<2x16x128xf32, #tpu.memory_space<vmem>> -> memref<1x16x128xf32, #tpu.memory_space<vmem>>
    %5 = tpu.memref_squeeze %4 : memref<1x16x128xf32, #tpu.memory_space<vmem>> -> memref<16x128xf32, #tpu.memory_space<vmem>>
    %c1 = arith.constant 1 : index
    %c0_6 = arith.constant 0 : index
    %6 = tpu.strided_load %5[%c1, %c0_6] {strides = array<i32: 2, 1>} : memref<16x128xf32, #tpu.memory_space<vmem>>, vector<8x128xf32>
    %7 = vector.extract_strided_slice %6 {offsets = [7, 0], sizes = [1, 128], strides = [1, 1]} : vector<8x128xf32> to vector<1x128xf32>
    %c1_i32 = arith.constant 1 : i32
    %8 = tpu.dynamic_rotate %7 by %c1_i32 dim 1 : vector<1x128xf32>, i32 -> vector<1x128xf32>
    %c0_i32_7 = arith.constant 0 : i32
    %9 = vector.broadcast %c0_i32_7 : i32 to vector<1x128xi32>
    %10 = arith.cmpi eq, %0, %9 : vector<1x128xi32>
    %cst = arith.constant 0.000000e+00 : f32
    %11 = vector.broadcast %cst : f32 to vector<1x128xf32>
    %12 = arith.select %10, %11, %8 : vector<1x128xi1>, vector<1x128xf32>
    %13 = vector.extract_strided_slice %6 {offsets = [0, 0], sizes = [7, 128], strides = [1, 1]} : vector<8x128xf32> to vector<7x128xf32>
    %14 = tpu.concatenate %12, %13 in 0 : vector<1x128xf32>, vector<7x128xf32> -> vector<8x128xf32>
    %c1_i32_8 = arith.constant 1 : i32
    %c0_i32_9 = arith.constant 0 : i32
    %c0_i32_10 = arith.constant 0 : i32
    %15 = tpu.memref_slice %arg1[%c1_i32_8, %c0_i32_9, %c0_i32_10] : memref<2x16x128xf32, #tpu.memory_space<vmem>> -> memref<1x16x128xf32, #tpu.memory_space<vmem>>
    %16 = tpu.memref_squeeze %15 : memref<1x16x128xf32, #tpu.memory_space<vmem>> -> memref<16x128xf32, #tpu.memory_space<vmem>>
    %c0_11 = arith.constant 0 : index
    %c0_12 = arith.constant 0 : index
    %17 = tpu.strided_load %16[%c0_11, %c0_12] {strides = array<i32: 2, 1>} : memref<16x128xf32, #tpu.memory_space<vmem>>, vector<8x128xf32>
    %c1_i32_13 = arith.constant 1 : i32
    %c0_i32_14 = arith.constant 0 : i32
    %c0_i32_15 = arith.constant 0 : i32
    %18 = tpu.memref_slice %arg1[%c1_i32_13, %c0_i32_14, %c0_i32_15] : memref<2x16x128xf32, #tpu.memory_space<vmem>> -> memref<1x16x128xf32, #tpu.memory_space<vmem>>
    %19 = tpu.memref_squeeze %18 : memref<1x16x128xf32, #tpu.memory_space<vmem>> -> memref<16x128xf32, #tpu.memory_space<vmem>>
    %c1_16 = arith.constant 1 : index
    %c0_17 = arith.constant 0 : index
    %20 = tpu.strided_load %19[%c1_16, %c0_17] {strides = array<i32: 2, 1>} : memref<16x128xf32, #tpu.memory_space<vmem>>, vector<8x128xf32>
    %21 = vector.extract_strided_slice %20 {offsets = [7, 0], sizes = [1, 128], strides = [1, 1]} : vector<8x128xf32> to vector<1x128xf32>
    %c1_i32_18 = arith.constant 1 : i32
    %22 = tpu.dynamic_rotate %21 by %c1_i32_18 dim 1 : vector<1x128xf32>, i32 -> vector<1x128xf32>
    %c0_i32_19 = arith.constant 0 : i32
    %23 = vector.broadcast %c0_i32_19 : i32 to vector<1x128xi32>
    %24 = arith.cmpi eq, %0, %23 : vector<1x128xi32>
    %cst_20 = arith.constant 0.000000e+00 : f32
    %25 = vector.broadcast %cst_20 : f32 to vector<1x128xf32>
    %26 = arith.select %24, %25, %22 : vector<1x128xi1>, vector<1x128xf32>
    %27 = vector.extract_strided_slice %20 {offsets = [0, 0], sizes = [7, 128], strides = [1, 1]} : vector<8x128xf32> to vector<7x128xf32>
    %28 = tpu.concatenate %26, %27 in 0 : vector<1x128xf32>, vector<7x128xf32> -> vector<8x128xf32>
    %c0_21 = arith.constant 0 : index
    %29 = memref.load %arg2[%c0_21] : memref<117xf32, #tpu.memory_space<smem>>
    %30 = vector.broadcast %29 : f32 to vector<8x128xf32>
    %31 = arith.mulf %30, %14 : vector<8x128xf32>
    %c1_22 = arith.constant 1 : index
    %32 = memref.load %arg2[%c1_22] : memref<117xf32, #tpu.memory_space<smem>>
    %33 = vector.broadcast %32 : f32 to vector<8x128xf32>
    %34 = arith.mulf %33, %3 : vector<8x128xf32>
    %35 = arith.addf %31, %34 : vector<8x128xf32>
    %c2 = arith.constant 2 : index
    %36 = memref.load %arg2[%c2] : memref<117xf32, #tpu.memory_space<smem>>
    %37 = vector.broadcast %36 : f32 to vector<8x128xf32>
    %38 = arith.mulf %37, %6 : vector<8x128xf32>
    %39 = arith.addf %35, %38 : vector<8x128xf32>
    %c3 = arith.constant 3 : index
    %40 = memref.load %arg2[%c3] : memref<117xf32, #tpu.memory_space<smem>>
    %41 = vector.broadcast %40 : f32 to vector<8x128xf32>
    %42 = arith.mulf %41, %28 : vector<8x128xf32>
    %c4 = arith.constant 4 : index
    %43 = memref.load %arg2[%c4] : memref<117xf32, #tpu.memory_space<smem>>
    %44 = vector.broadcast %43 : f32 to vector<8x128xf32>
    %45 = arith.mulf %44, %17 : vector<8x128xf32>
    %46 = arith.addf %42, %45 : vector<8x128xf32>
    %c5 = arith.constant 5 : index
    %47 = memref.load %arg2[%c5] : memref<117xf32, #tpu.memory_space<smem>>
    %48 = vector.broadcast %47 : f32 to vector<8x128xf32>
    %49 = arith.mulf %48, %20 : vector<8x128xf32>
    %50 = arith.addf %46, %49 : vector<8x128xf32>
    %51 = arith.addf %39, %50 : vector<8x128xf32>
    %c0_23 = arith.constant 0 : index
    %52 = memref.load %arg3[%c0_23] : memref<14xf32, #tpu.memory_space<smem>>
    %53 = vector.broadcast %52 : f32 to vector<8x128xf32>
    %54 = arith.addf %51, %53 : vector<8x128xf32>
    %cst_24 = arith.constant 0.000000e+00 : f32
    %55 = vector.broadcast %cst_24 : f32 to vector<8x128xf32>
    %56 = arith.maximumf %54, %55 : vector<8x128xf32>
    %c6 = arith.constant 6 : index
    %57 = memref.load %arg2[%c6] : memref<117xf32, #tpu.memory_space<smem>>
    %58 = vector.broadcast %57 : f32 to vector<8x128xf32>
    %59 = arith.mulf %58, %14 : vector<8x128xf32>
    %c7 = arith.constant 7 : index
    %60 = memref.load %arg2[%c7] : memref<117xf32, #tpu.memory_space<smem>>
    %61 = vector.broadcast %60 : f32 to vector<8x128xf32>
    %62 = arith.mulf %61, %3 : vector<8x128xf32>
    %63 = arith.addf %59, %62 : vector<8x128xf32>
    %c8 = arith.constant 8 : index
    %64 = memref.load %arg2[%c8] : memref<117xf32, #tpu.memory_space<smem>>
    %65 = vector.broadcast %64 : f32 to vector<8x128xf32>
    %66 = arith.mulf %65, %6 : vector<8x128xf32>
    %67 = arith.addf %63, %66 : vector<8x128xf32>
    %c9 = arith.constant 9 : index
    %68 = memref.load %arg2[%c9] : memref<117xf32, #tpu.memory_space<smem>>
    %69 = vector.broadcast %68 : f32 to vector<8x128xf32>
    %70 = arith.mulf %69, %28 : vector<8x128xf32>
    %c10 = arith.constant 10 : index
    %71 = memref.load %arg2[%c10] : memref<117xf32, #tpu.memory_space<smem>>
    %72 = vector.broadcast %71 : f32 to vector<8x128xf32>
    %73 = arith.mulf %72, %17 : vector<8x128xf32>
    %74 = arith.addf %70, %73 : vector<8x128xf32>
    %c11 = arith.constant 11 : index
    %75 = memref.load %arg2[%c11] : memref<117xf32, #tpu.memory_space<smem>>
    %76 = vector.broadcast %75 : f32 to vector<8x128xf32>
    %77 = arith.mulf %76, %20 : vector<8x128xf32>
    %78 = arith.addf %74, %77 : vector<8x128xf32>
    %79 = arith.addf %67, %78 : vector<8x128xf32>
    %c1_25 = arith.constant 1 : index
    %80 = memref.load %arg3[%c1_25] : memref<14xf32, #tpu.memory_space<smem>>
    %81 = vector.broadcast %80 : f32 to vector<8x128xf32>
    %82 = arith.addf %79, %81 : vector<8x128xf32>
    %cst_26 = arith.constant 0.000000e+00 : f32
    %83 = vector.broadcast %cst_26 : f32 to vector<8x128xf32>
    %84 = arith.maximumf %82, %83 : vector<8x128xf32>
    %c12 = arith.constant 12 : index
    %85 = memref.load %arg2[%c12] : memref<117xf32, #tpu.memory_space<smem>>
    %86 = vector.broadcast %85 : f32 to vector<8x128xf32>
    %87 = arith.mulf %86, %14 : vector<8x128xf32>
    %c13 = arith.constant 13 : index
    %88 = memref.load %arg2[%c13] : memref<117xf32, #tpu.memory_space<smem>>
    %89 = vector.broadcast %88 : f32 to vector<8x128xf32>
    %90 = arith.mulf %89, %3 : vector<8x128xf32>
    %91 = arith.addf %87, %90 : vector<8x128xf32>
    %c14 = arith.constant 14 : index
    %92 = memref.load %arg2[%c14] : memref<117xf32, #tpu.memory_space<smem>>
    %93 = vector.broadcast %92 : f32 to vector<8x128xf32>
    %94 = arith.mulf %93, %6 : vector<8x128xf32>
    %95 = arith.addf %91, %94 : vector<8x128xf32>
    %c15 = arith.constant 15 : index
    %96 = memref.load %arg2[%c15] : memref<117xf32, #tpu.memory_space<smem>>
    %97 = vector.broadcast %96 : f32 to vector<8x128xf32>
    %98 = arith.mulf %97, %28 : vector<8x128xf32>
    %c16 = arith.constant 16 : index
    %99 = memref.load %arg2[%c16] : memref<117xf32, #tpu.memory_space<smem>>
    %100 = vector.broadcast %99 : f32 to vector<8x128xf32>
    %101 = arith.mulf %100, %17 : vector<8x128xf32>
    %102 = arith.addf %98, %101 : vector<8x128xf32>
    %c17 = arith.constant 17 : index
    %103 = memref.load %arg2[%c17] : memref<117xf32, #tpu.memory_space<smem>>
    %104 = vector.broadcast %103 : f32 to vector<8x128xf32>
    %105 = arith.mulf %104, %20 : vector<8x128xf32>
    %106 = arith.addf %102, %105 : vector<8x128xf32>
    %107 = arith.addf %95, %106 : vector<8x128xf32>
    %c2_27 = arith.constant 2 : index
    %108 = memref.load %arg3[%c2_27] : memref<14xf32, #tpu.memory_space<smem>>
    %109 = vector.broadcast %108 : f32 to vector<8x128xf32>
    %110 = arith.addf %107, %109 : vector<8x128xf32>
    %cst_28 = arith.constant 0.000000e+00 : f32
    %111 = vector.broadcast %cst_28 : f32 to vector<8x128xf32>
    %112 = arith.maximumf %110, %111 : vector<8x128xf32>
    %c18 = arith.constant 18 : index
    %113 = memref.load %arg2[%c18] : memref<117xf32, #tpu.memory_space<smem>>
    %114 = vector.broadcast %113 : f32 to vector<8x128xf32>
    %115 = arith.mulf %114, %14 : vector<8x128xf32>
    %c19 = arith.constant 19 : index
    %116 = memref.load %arg2[%c19] : memref<117xf32, #tpu.memory_space<smem>>
    %117 = vector.broadcast %116 : f32 to vector<8x128xf32>
    %118 = arith.mulf %117, %3 : vector<8x128xf32>
    %119 = arith.addf %115, %118 : vector<8x128xf32>
    %c20 = arith.constant 20 : index
    %120 = memref.load %arg2[%c20] : memref<117xf32, #tpu.memory_space<smem>>
    %121 = vector.broadcast %120 : f32 to vector<8x128xf32>
    %122 = arith.mulf %121, %6 : vector<8x128xf32>
    %123 = arith.addf %119, %122 : vector<8x128xf32>
    %c21 = arith.constant 21 : index
    %124 = memref.load %arg2[%c21] : memref<117xf32, #tpu.memory_space<smem>>
    %125 = vector.broadcast %124 : f32 to vector<8x128xf32>
    %126 = arith.mulf %125, %28 : vector<8x128xf32>
    %c22 = arith.constant 22 : index
    %127 = memref.load %arg2[%c22] : memref<117xf32, #tpu.memory_space<smem>>
    %128 = vector.broadcast %127 : f32 to vector<8x128xf32>
    %129 = arith.mulf %128, %17 : vector<8x128xf32>
    %130 = arith.addf %126, %129 : vector<8x128xf32>
    %c23 = arith.constant 23 : index
    %131 = memref.load %arg2[%c23] : memref<117xf32, #tpu.memory_space<smem>>
    %132 = vector.broadcast %131 : f32 to vector<8x128xf32>
    %133 = arith.mulf %132, %20 : vector<8x128xf32>
    %134 = arith.addf %130, %133 : vector<8x128xf32>
    %135 = arith.addf %123, %134 : vector<8x128xf32>
    %c3_29 = arith.constant 3 : index
    %136 = memref.load %arg3[%c3_29] : memref<14xf32, #tpu.memory_space<smem>>
    %137 = vector.broadcast %136 : f32 to vector<8x128xf32>
    %138 = arith.addf %135, %137 : vector<8x128xf32>
    %cst_30 = arith.constant 0.000000e+00 : f32
    %139 = vector.broadcast %cst_30 : f32 to vector<8x128xf32>
    %140 = arith.maximumf %138, %139 : vector<8x128xf32>
    %141 = vector.extract_strided_slice %56 {offsets = [0, 0], sizes = [1, 128], strides = [1, 1]} : vector<8x128xf32> to vector<1x128xf32>
    %142 = vector.extract_strided_slice %56 {offsets = [2, 0], sizes = [1, 128], strides = [1, 1]} : vector<8x128xf32> to vector<1x128xf32>
    %143 = vector.extract_strided_slice %56 {offsets = [4, 0], sizes = [1, 128], strides = [1, 1]} : vector<8x128xf32> to vector<1x128xf32>
    %144 = vector.extract_strided_slice %56 {offsets = [6, 0], sizes = [1, 128], strides = [1, 1]} : vector<8x128xf32> to vector<1x128xf32>
    %145 = tpu.concatenate %141, %142, %143, %144 in 0 : vector<1x128xf32>, vector<1x128xf32>, vector<1x128xf32>, vector<1x128xf32> -> vector<4x128xf32>
    %146 = vector.extract_strided_slice %56 {offsets = [1, 0], sizes = [1, 128], strides = [1, 1]} : vector<8x128xf32> to vector<1x128xf32>
    %147 = vector.extract_strided_slice %56 {offsets = [3, 0], sizes = [1, 128], strides = [1, 1]} : vector<8x128xf32> to vector<1x128xf32>
    %148 = vector.extract_strided_slice %56 {offsets = [5, 0], sizes = [1, 128], strides = [1, 1]} : vector<8x128xf32> to vector<1x128xf32>
    %149 = vector.extract_strided_slice %56 {offsets = [7, 0], sizes = [1, 128], strides = [1, 1]} : vector<8x128xf32> to vector<1x128xf32>
    %150 = tpu.concatenate %146, %147, %148, %149 in 0 : vector<1x128xf32>, vector<1x128xf32>, vector<1x128xf32>, vector<1x128xf32> -> vector<4x128xf32>
    %151 = vector.extract_strided_slice %150 {offsets = [3, 0], sizes = [1, 128], strides = [1, 1]} : vector<4x128xf32> to vector<1x128xf32>
    %c1_i32_31 = arith.constant 1 : i32
    %152 = tpu.dynamic_rotate %151 by %c1_i32_31 dim 1 : vector<1x128xf32>, i32 -> vector<1x128xf32>
    %c0_i32_32 = arith.constant 0 : i32
    %153 = vector.broadcast %c0_i32_32 : i32 to vector<1x128xi32>
    %154 = arith.cmpi eq, %0, %153 : vector<1x128xi32>
    %cst_33 = arith.constant 0.000000e+00 : f32
    %155 = vector.broadcast %cst_33 : f32 to vector<1x128xf32>
    %156 = arith.select %154, %155, %152 : vector<1x128xi1>, vector<1x128xf32>
    %157 = vector.extract_strided_slice %150 {offsets = [0, 0], sizes = [3, 128], strides = [1, 1]} : vector<4x128xf32> to vector<3x128xf32>
    %158 = tpu.concatenate %156, %157 in 0 : vector<1x128xf32>, vector<3x128xf32> -> vector<4x128xf32>
    %159 = vector.extract_strided_slice %84 {offsets = [0, 0], sizes = [1, 128], strides = [1, 1]} : vector<8x128xf32> to vector<1x128xf32>
    %160 = vector.extract_strided_slice %84 {offsets = [2, 0], sizes = [1, 128], strides = [1, 1]} : vector<8x128xf32> to vector<1x128xf32>
    %161 = vector.extract_strided_slice %84 {offsets = [4, 0], sizes = [1, 128], strides = [1, 1]} : vector<8x128xf32> to vector<1x128xf32>
    %162 = vector.extract_strided_slice %84 {offsets = [6, 0], sizes = [1, 128], strides = [1, 1]} : vector<8x128xf32> to vector<1x128xf32>
    %163 = tpu.concatenate %159, %160, %161, %162 in 0 : vector<1x128xf32>, vector<1x128xf32>, vector<1x128xf32>, vector<1x128xf32> -> vector<4x128xf32>
    %164 = vector.extract_strided_slice %84 {offsets = [1, 0], sizes = [1, 128], strides = [1, 1]} : vector<8x128xf32> to vector<1x128xf32>
    %165 = vector.extract_strided_slice %84 {offsets = [3, 0], sizes = [1, 128], strides = [1, 1]} : vector<8x128xf32> to vector<1x128xf32>
    %166 = vector.extract_strided_slice %84 {offsets = [5, 0], sizes = [1, 128], strides = [1, 1]} : vector<8x128xf32> to vector<1x128xf32>
    %167 = vector.extract_strided_slice %84 {offsets = [7, 0], sizes = [1, 128], strides = [1, 1]} : vector<8x128xf32> to vector<1x128xf32>
    %168 = tpu.concatenate %164, %165, %166, %167 in 0 : vector<1x128xf32>, vector<1x128xf32>, vector<1x128xf32>, vector<1x128xf32> -> vector<4x128xf32>
    %169 = vector.extract_strided_slice %168 {offsets = [3, 0], sizes = [1, 128], strides = [1, 1]} : vector<4x128xf32> to vector<1x128xf32>
    %c1_i32_34 = arith.constant 1 : i32
    %170 = tpu.dynamic_rotate %169 by %c1_i32_34 dim 1 : vector<1x128xf32>, i32 -> vector<1x128xf32>
    %c0_i32_35 = arith.constant 0 : i32
    %171 = vector.broadcast %c0_i32_35 : i32 to vector<1x128xi32>
    %172 = arith.cmpi eq, %0, %171 : vector<1x128xi32>
    %cst_36 = arith.constant 0.000000e+00 : f32
    %173 = vector.broadcast %cst_36 : f32 to vector<1x128xf32>
    %174 = arith.select %172, %173, %170 : vector<1x128xi1>, vector<1x128xf32>
    %175 = vector.extract_strided_slice %168 {offsets = [0, 0], sizes = [3, 128], strides = [1, 1]} : vector<4x128xf32> to vector<3x128xf32>
    %176 = tpu.concatenate %174, %175 in 0 : vector<1x128xf32>, vector<3x128xf32> -> vector<4x128xf32>
    %177 = vector.extract_strided_slice %112 {offsets = [0, 0], sizes = [1, 128], strides = [1, 1]} : vector<8x128xf32> to vector<1x128xf32>
    %178 = vector.extract_strided_slice %112 {offsets = [2, 0], sizes = [1, 128], strides = [1, 1]} : vector<8x128xf32> to vector<1x128xf32>
    %179 = vector.extract_strided_slice %112 {offsets = [4, 0], sizes = [1, 128], strides = [1, 1]} : vector<8x128xf32> to vector<1x128xf32>
    %180 = vector.extract_strided_slice %112 {offsets = [6, 0], sizes = [1, 128], strides = [1, 1]} : vector<8x128xf32> to vector<1x128xf32>
    %181 = tpu.concatenate %177, %178, %179, %180 in 0 : vector<1x128xf32>, vector<1x128xf32>, vector<1x128xf32>, vector<1x128xf32> -> vector<4x128xf32>
    %182 = vector.extract_strided_slice %112 {offsets = [1, 0], sizes = [1, 128], strides = [1, 1]} : vector<8x128xf32> to vector<1x128xf32>
    %183 = vector.extract_strided_slice %112 {offsets = [3, 0], sizes = [1, 128], strides = [1, 1]} : vector<8x128xf32> to vector<1x128xf32>
    %184 = vector.extract_strided_slice %112 {offsets = [5, 0], sizes = [1, 128], strides = [1, 1]} : vector<8x128xf32> to vector<1x128xf32>
    %185 = vector.extract_strided_slice %112 {offsets = [7, 0], sizes = [1, 128], strides = [1, 1]} : vector<8x128xf32> to vector<1x128xf32>
    %186 = tpu.concatenate %182, %183, %184, %185 in 0 : vector<1x128xf32>, vector<1x128xf32>, vector<1x128xf32>, vector<1x128xf32> -> vector<4x128xf32>
    %187 = vector.extract_strided_slice %186 {offsets = [3, 0], sizes = [1, 128], strides = [1, 1]} : vector<4x128xf32> to vector<1x128xf32>
    %c1_i32_37 = arith.constant 1 : i32
    %188 = tpu.dynamic_rotate %187 by %c1_i32_37 dim 1 : vector<1x128xf32>, i32 -> vector<1x128xf32>
    %c0_i32_38 = arith.constant 0 : i32
    %189 = vector.broadcast %c0_i32_38 : i32 to vector<1x128xi32>
    %190 = arith.cmpi eq, %0, %189 : vector<1x128xi32>
    %cst_39 = arith.constant 0.000000e+00 : f32
    %191 = vector.broadcast %cst_39 : f32 to vector<1x128xf32>
    %192 = arith.select %190, %191, %188 : vector<1x128xi1>, vector<1x128xf32>
    %193 = vector.extract_strided_slice %186 {offsets = [0, 0], sizes = [3, 128], strides = [1, 1]} : vector<4x128xf32> to vector<3x128xf32>
    %194 = tpu.concatenate %192, %193 in 0 : vector<1x128xf32>, vector<3x128xf32> -> vector<4x128xf32>
    %195 = vector.extract_strided_slice %140 {offsets = [0, 0], sizes = [1, 128], strides = [1, 1]} : vector<8x128xf32> to vector<1x128xf32>
    %196 = vector.extract_strided_slice %140 {offsets = [2, 0], sizes = [1, 128], strides = [1, 1]} : vector<8x128xf32> to vector<1x128xf32>
    %197 = vector.extract_strided_slice %140 {offsets = [4, 0], sizes = [1, 128], strides = [1, 1]} : vector<8x128xf32> to vector<1x128xf32>
    %198 = vector.extract_strided_slice %140 {offsets = [6, 0], sizes = [1, 128], strides = [1, 1]} : vector<8x128xf32> to vector<1x128xf32>
    %199 = tpu.concatenate %195, %196, %197, %198 in 0 : vector<1x128xf32>, vector<1x128xf32>, vector<1x128xf32>, vector<1x128xf32> -> vector<4x128xf32>
    %200 = vector.extract_strided_slice %140 {offsets = [1, 0], sizes = [1, 128], strides = [1, 1]} : vector<8x128xf32> to vector<1x128xf32>
    %201 = vector.extract_strided_slice %140 {offsets = [3, 0], sizes = [1, 128], strides = [1, 1]} : vector<8x128xf32> to vector<1x128xf32>
    %202 = vector.extract_strided_slice %140 {offsets = [5, 0], sizes = [1, 128], strides = [1, 1]} : vector<8x128xf32> to vector<1x128xf32>
    %203 = vector.extract_strided_slice %140 {offsets = [7, 0], sizes = [1, 128], strides = [1, 1]} : vector<8x128xf32> to vector<1x128xf32>
    %204 = tpu.concatenate %200, %201, %202, %203 in 0 : vector<1x128xf32>, vector<1x128xf32>, vector<1x128xf32>, vector<1x128xf32> -> vector<4x128xf32>
    %205 = vector.extract_strided_slice %204 {offsets = [3, 0], sizes = [1, 128], strides = [1, 1]} : vector<4x128xf32> to vector<1x128xf32>
    %c1_i32_40 = arith.constant 1 : i32
    %206 = tpu.dynamic_rotate %205 by %c1_i32_40 dim 1 : vector<1x128xf32>, i32 -> vector<1x128xf32>
    %c0_i32_41 = arith.constant 0 : i32
    %207 = vector.broadcast %c0_i32_41 : i32 to vector<1x128xi32>
    %208 = arith.cmpi eq, %0, %207 : vector<1x128xi32>
    %cst_42 = arith.constant 0.000000e+00 : f32
    %209 = vector.broadcast %cst_42 : f32 to vector<1x128xf32>
    %210 = arith.select %208, %209, %206 : vector<1x128xi1>, vector<1x128xf32>
    %211 = vector.extract_strided_slice %204 {offsets = [0, 0], sizes = [3, 128], strides = [1, 1]} : vector<4x128xf32> to vector<3x128xf32>
    %212 = tpu.concatenate %210, %211 in 0 : vector<1x128xf32>, vector<3x128xf32> -> vector<4x128xf32>
    %c24 = arith.constant 24 : index
    %213 = memref.load %arg2[%c24] : memref<117xf32, #tpu.memory_space<smem>>
    %214 = vector.broadcast %213 : f32 to vector<4x128xf32>
    %215 = arith.mulf %214, %158 : vector<4x128xf32>
    %c25 = arith.constant 25 : index
    %216 = memref.load %arg2[%c25] : memref<117xf32, #tpu.memory_space<smem>>
    %217 = vector.broadcast %216 : f32 to vector<4x128xf32>
    %218 = arith.mulf %217, %145 : vector<4x128xf32>
    %219 = arith.addf %215, %218 : vector<4x128xf32>
    %c26 = arith.constant 26 : index
    %220 = memref.load %arg2[%c26] : memref<117xf32, #tpu.memory_space<smem>>
    %221 = vector.broadcast %220 : f32 to vector<4x128xf32>
    %222 = arith.mulf %221, %150 : vector<4x128xf32>
    %223 = arith.addf %219, %222 : vector<4x128xf32>
    %c27 = arith.constant 27 : index
    %224 = memref.load %arg2[%c27] : memref<117xf32, #tpu.memory_space<smem>>
    %225 = vector.broadcast %224 : f32 to vector<4x128xf32>
    %226 = arith.mulf %225, %176 : vector<4x128xf32>
    %c28 = arith.constant 28 : index
    %227 = memref.load %arg2[%c28] : memref<117xf32, #tpu.memory_space<smem>>
    %228 = vector.broadcast %227 : f32 to vector<4x128xf32>
    %229 = arith.mulf %228, %163 : vector<4x128xf32>
    %230 = arith.addf %226, %229 : vector<4x128xf32>
    %c29 = arith.constant 29 : index
    %231 = memref.load %arg2[%c29] : memref<117xf32, #tpu.memory_space<smem>>
    %232 = vector.broadcast %231 : f32 to vector<4x128xf32>
    %233 = arith.mulf %232, %168 : vector<4x128xf32>
    %234 = arith.addf %230, %233 : vector<4x128xf32>
    %235 = arith.addf %223, %234 : vector<4x128xf32>
    %c30 = arith.constant 30 : index
    %236 = memref.load %arg2[%c30] : memref<117xf32, #tpu.memory_space<smem>>
    %237 = vector.broadcast %236 : f32 to vector<4x128xf32>
    %238 = arith.mulf %237, %194 : vector<4x128xf32>
    %c31 = arith.constant 31 : index
    %239 = memref.load %arg2[%c31] : memref<117xf32, #tpu.memory_space<smem>>
    %240 = vector.broadcast %239 : f32 to vector<4x128xf32>
    %241 = arith.mulf %240, %181 : vector<4x128xf32>
    %242 = arith.addf %238, %241 : vector<4x128xf32>
    %c32 = arith.constant 32 : index
    %243 = memref.load %arg2[%c32] : memref<117xf32, #tpu.memory_space<smem>>
    %244 = vector.broadcast %243 : f32 to vector<4x128xf32>
    %245 = arith.mulf %244, %186 : vector<4x128xf32>
    %246 = arith.addf %242, %245 : vector<4x128xf32>
    %247 = arith.addf %235, %246 : vector<4x128xf32>
    %c33 = arith.constant 33 : index
    %248 = memref.load %arg2[%c33] : memref<117xf32, #tpu.memory_space<smem>>
    %249 = vector.broadcast %248 : f32 to vector<4x128xf32>
    %250 = arith.mulf %249, %212 : vector<4x128xf32>
    %c34 = arith.constant 34 : index
    %251 = memref.load %arg2[%c34] : memref<117xf32, #tpu.memory_space<smem>>
    %252 = vector.broadcast %251 : f32 to vector<4x128xf32>
    %253 = arith.mulf %252, %199 : vector<4x128xf32>
    %254 = arith.addf %250, %253 : vector<4x128xf32>
    %c35 = arith.constant 35 : index
    %255 = memref.load %arg2[%c35] : memref<117xf32, #tpu.memory_space<smem>>
    %256 = vector.broadcast %255 : f32 to vector<4x128xf32>
    %257 = arith.mulf %256, %204 : vector<4x128xf32>
    %258 = arith.addf %254, %257 : vector<4x128xf32>
    %259 = arith.addf %247, %258 : vector<4x128xf32>
    %c4_43 = arith.constant 4 : index
    %260 = memref.load %arg3[%c4_43] : memref<14xf32, #tpu.memory_space<smem>>
    %261 = vector.broadcast %260 : f32 to vector<4x128xf32>
    %262 = arith.addf %259, %261 : vector<4x128xf32>
    %cst_44 = arith.constant 0.000000e+00 : f32
    %263 = vector.broadcast %cst_44 : f32 to vector<4x128xf32>
    %264 = arith.maximumf %262, %263 : vector<4x128xf32>
    %c36 = arith.constant 36 : index
    %265 = memref.load %arg2[%c36] : memref<117xf32, #tpu.memory_space<smem>>
    %266 = vector.broadcast %265 : f32 to vector<4x128xf32>
    %267 = arith.mulf %266, %158 : vector<4x128xf32>
    %c37 = arith.constant 37 : index
    %268 = memref.load %arg2[%c37] : memref<117xf32, #tpu.memory_space<smem>>
    %269 = vector.broadcast %268 : f32 to vector<4x128xf32>
    %270 = arith.mulf %269, %145 : vector<4x128xf32>
    %271 = arith.addf %267, %270 : vector<4x128xf32>
    %c38 = arith.constant 38 : index
    %272 = memref.load %arg2[%c38] : memref<117xf32, #tpu.memory_space<smem>>
    %273 = vector.broadcast %272 : f32 to vector<4x128xf32>
    %274 = arith.mulf %273, %150 : vector<4x128xf32>
    %275 = arith.addf %271, %274 : vector<4x128xf32>
    %c39 = arith.constant 39 : index
    %276 = memref.load %arg2[%c39] : memref<117xf32, #tpu.memory_space<smem>>
    %277 = vector.broadcast %276 : f32 to vector<4x128xf32>
    %278 = arith.mulf %277, %176 : vector<4x128xf32>
    %c40 = arith.constant 40 : index
    %279 = memref.load %arg2[%c40] : memref<117xf32, #tpu.memory_space<smem>>
    %280 = vector.broadcast %279 : f32 to vector<4x128xf32>
    %281 = arith.mulf %280, %163 : vector<4x128xf32>
    %282 = arith.addf %278, %281 : vector<4x128xf32>
    %c41 = arith.constant 41 : index
    %283 = memref.load %arg2[%c41] : memref<117xf32, #tpu.memory_space<smem>>
    %284 = vector.broadcast %283 : f32 to vector<4x128xf32>
    %285 = arith.mulf %284, %168 : vector<4x128xf32>
    %286 = arith.addf %282, %285 : vector<4x128xf32>
    %287 = arith.addf %275, %286 : vector<4x128xf32>
    %c42 = arith.constant 42 : index
    %288 = memref.load %arg2[%c42] : memref<117xf32, #tpu.memory_space<smem>>
    %289 = vector.broadcast %288 : f32 to vector<4x128xf32>
    %290 = arith.mulf %289, %194 : vector<4x128xf32>
    %c43 = arith.constant 43 : index
    %291 = memref.load %arg2[%c43] : memref<117xf32, #tpu.memory_space<smem>>
    %292 = vector.broadcast %291 : f32 to vector<4x128xf32>
    %293 = arith.mulf %292, %181 : vector<4x128xf32>
    %294 = arith.addf %290, %293 : vector<4x128xf32>
    %c44 = arith.constant 44 : index
    %295 = memref.load %arg2[%c44] : memref<117xf32, #tpu.memory_space<smem>>
    %296 = vector.broadcast %295 : f32 to vector<4x128xf32>
    %297 = arith.mulf %296, %186 : vector<4x128xf32>
    %298 = arith.addf %294, %297 : vector<4x128xf32>
    %299 = arith.addf %287, %298 : vector<4x128xf32>
    %c45 = arith.constant 45 : index
    %300 = memref.load %arg2[%c45] : memref<117xf32, #tpu.memory_space<smem>>
    %301 = vector.broadcast %300 : f32 to vector<4x128xf32>
    %302 = arith.mulf %301, %212 : vector<4x128xf32>
    %c46 = arith.constant 46 : index
    %303 = memref.load %arg2[%c46] : memref<117xf32, #tpu.memory_space<smem>>
    %304 = vector.broadcast %303 : f32 to vector<4x128xf32>
    %305 = arith.mulf %304, %199 : vector<4x128xf32>
    %306 = arith.addf %302, %305 : vector<4x128xf32>
    %c47 = arith.constant 47 : index
    %307 = memref.load %arg2[%c47] : memref<117xf32, #tpu.memory_space<smem>>
    %308 = vector.broadcast %307 : f32 to vector<4x128xf32>
    %309 = arith.mulf %308, %204 : vector<4x128xf32>
    %310 = arith.addf %306, %309 : vector<4x128xf32>
    %311 = arith.addf %299, %310 : vector<4x128xf32>
    %c5_45 = arith.constant 5 : index
    %312 = memref.load %arg3[%c5_45] : memref<14xf32, #tpu.memory_space<smem>>
    %313 = vector.broadcast %312 : f32 to vector<4x128xf32>
    %314 = arith.addf %311, %313 : vector<4x128xf32>
    %cst_46 = arith.constant 0.000000e+00 : f32
    %315 = vector.broadcast %cst_46 : f32 to vector<4x128xf32>
    %316 = arith.maximumf %314, %315 : vector<4x128xf32>
    %c48 = arith.constant 48 : index
    %317 = memref.load %arg2[%c48] : memref<117xf32, #tpu.memory_space<smem>>
    %318 = vector.broadcast %317 : f32 to vector<4x128xf32>
    %319 = arith.mulf %318, %158 : vector<4x128xf32>
    %c49 = arith.constant 49 : index
    %320 = memref.load %arg2[%c49] : memref<117xf32, #tpu.memory_space<smem>>
    %321 = vector.broadcast %320 : f32 to vector<4x128xf32>
    %322 = arith.mulf %321, %145 : vector<4x128xf32>
    %323 = arith.addf %319, %322 : vector<4x128xf32>
    %c50 = arith.constant 50 : index
    %324 = memref.load %arg2[%c50] : memref<117xf32, #tpu.memory_space<smem>>
    %325 = vector.broadcast %324 : f32 to vector<4x128xf32>
    %326 = arith.mulf %325, %150 : vector<4x128xf32>
    %327 = arith.addf %323, %326 : vector<4x128xf32>
    %c51 = arith.constant 51 : index
    %328 = memref.load %arg2[%c51] : memref<117xf32, #tpu.memory_space<smem>>
    %329 = vector.broadcast %328 : f32 to vector<4x128xf32>
    %330 = arith.mulf %329, %176 : vector<4x128xf32>
    %c52 = arith.constant 52 : index
    %331 = memref.load %arg2[%c52] : memref<117xf32, #tpu.memory_space<smem>>
    %332 = vector.broadcast %331 : f32 to vector<4x128xf32>
    %333 = arith.mulf %332, %163 : vector<4x128xf32>
    %334 = arith.addf %330, %333 : vector<4x128xf32>
    %c53 = arith.constant 53 : index
    %335 = memref.load %arg2[%c53] : memref<117xf32, #tpu.memory_space<smem>>
    %336 = vector.broadcast %335 : f32 to vector<4x128xf32>
    %337 = arith.mulf %336, %168 : vector<4x128xf32>
    %338 = arith.addf %334, %337 : vector<4x128xf32>
    %339 = arith.addf %327, %338 : vector<4x128xf32>
    %c54 = arith.constant 54 : index
    %340 = memref.load %arg2[%c54] : memref<117xf32, #tpu.memory_space<smem>>
    %341 = vector.broadcast %340 : f32 to vector<4x128xf32>
    %342 = arith.mulf %341, %194 : vector<4x128xf32>
    %c55 = arith.constant 55 : index
    %343 = memref.load %arg2[%c55] : memref<117xf32, #tpu.memory_space<smem>>
    %344 = vector.broadcast %343 : f32 to vector<4x128xf32>
    %345 = arith.mulf %344, %181 : vector<4x128xf32>
    %346 = arith.addf %342, %345 : vector<4x128xf32>
    %c56 = arith.constant 56 : index
    %347 = memref.load %arg2[%c56] : memref<117xf32, #tpu.memory_space<smem>>
    %348 = vector.broadcast %347 : f32 to vector<4x128xf32>
    %349 = arith.mulf %348, %186 : vector<4x128xf32>
    %350 = arith.addf %346, %349 : vector<4x128xf32>
    %351 = arith.addf %339, %350 : vector<4x128xf32>
    %c57 = arith.constant 57 : index
    %352 = memref.load %arg2[%c57] : memref<117xf32, #tpu.memory_space<smem>>
    %353 = vector.broadcast %352 : f32 to vector<4x128xf32>
    %354 = arith.mulf %353, %212 : vector<4x128xf32>
    %c58 = arith.constant 58 : index
    %355 = memref.load %arg2[%c58] : memref<117xf32, #tpu.memory_space<smem>>
    %356 = vector.broadcast %355 : f32 to vector<4x128xf32>
    %357 = arith.mulf %356, %199 : vector<4x128xf32>
    %358 = arith.addf %354, %357 : vector<4x128xf32>
    %c59 = arith.constant 59 : index
    %359 = memref.load %arg2[%c59] : memref<117xf32, #tpu.memory_space<smem>>
    %360 = vector.broadcast %359 : f32 to vector<4x128xf32>
    %361 = arith.mulf %360, %204 : vector<4x128xf32>
    %362 = arith.addf %358, %361 : vector<4x128xf32>
    %363 = arith.addf %351, %362 : vector<4x128xf32>
    %c6_47 = arith.constant 6 : index
    %364 = memref.load %arg3[%c6_47] : memref<14xf32, #tpu.memory_space<smem>>
    %365 = vector.broadcast %364 : f32 to vector<4x128xf32>
    %366 = arith.addf %363, %365 : vector<4x128xf32>
    %cst_48 = arith.constant 0.000000e+00 : f32
    %367 = vector.broadcast %cst_48 : f32 to vector<4x128xf32>
    %368 = arith.maximumf %366, %367 : vector<4x128xf32>
    %c60 = arith.constant 60 : index
    %369 = memref.load %arg2[%c60] : memref<117xf32, #tpu.memory_space<smem>>
    %370 = vector.broadcast %369 : f32 to vector<4x128xf32>
    %371 = arith.mulf %370, %158 : vector<4x128xf32>
    %c61 = arith.constant 61 : index
    %372 = memref.load %arg2[%c61] : memref<117xf32, #tpu.memory_space<smem>>
    %373 = vector.broadcast %372 : f32 to vector<4x128xf32>
    %374 = arith.mulf %373, %145 : vector<4x128xf32>
    %375 = arith.addf %371, %374 : vector<4x128xf32>
    %c62 = arith.constant 62 : index
    %376 = memref.load %arg2[%c62] : memref<117xf32, #tpu.memory_space<smem>>
    %377 = vector.broadcast %376 : f32 to vector<4x128xf32>
    %378 = arith.mulf %377, %150 : vector<4x128xf32>
    %379 = arith.addf %375, %378 : vector<4x128xf32>
    %c63 = arith.constant 63 : index
    %380 = memref.load %arg2[%c63] : memref<117xf32, #tpu.memory_space<smem>>
    %381 = vector.broadcast %380 : f32 to vector<4x128xf32>
    %382 = arith.mulf %381, %176 : vector<4x128xf32>
    %c64 = arith.constant 64 : index
    %383 = memref.load %arg2[%c64] : memref<117xf32, #tpu.memory_space<smem>>
    %384 = vector.broadcast %383 : f32 to vector<4x128xf32>
    %385 = arith.mulf %384, %163 : vector<4x128xf32>
    %386 = arith.addf %382, %385 : vector<4x128xf32>
    %c65 = arith.constant 65 : index
    %387 = memref.load %arg2[%c65] : memref<117xf32, #tpu.memory_space<smem>>
    %388 = vector.broadcast %387 : f32 to vector<4x128xf32>
    %389 = arith.mulf %388, %168 : vector<4x128xf32>
    %390 = arith.addf %386, %389 : vector<4x128xf32>
    %391 = arith.addf %379, %390 : vector<4x128xf32>
    %c66 = arith.constant 66 : index
    %392 = memref.load %arg2[%c66] : memref<117xf32, #tpu.memory_space<smem>>
    %393 = vector.broadcast %392 : f32 to vector<4x128xf32>
    %394 = arith.mulf %393, %194 : vector<4x128xf32>
    %c67 = arith.constant 67 : index
    %395 = memref.load %arg2[%c67] : memref<117xf32, #tpu.memory_space<smem>>
    %396 = vector.broadcast %395 : f32 to vector<4x128xf32>
    %397 = arith.mulf %396, %181 : vector<4x128xf32>
    %398 = arith.addf %394, %397 : vector<4x128xf32>
    %c68 = arith.constant 68 : index
    %399 = memref.load %arg2[%c68] : memref<117xf32, #tpu.memory_space<smem>>
    %400 = vector.broadcast %399 : f32 to vector<4x128xf32>
    %401 = arith.mulf %400, %186 : vector<4x128xf32>
    %402 = arith.addf %398, %401 : vector<4x128xf32>
    %403 = arith.addf %391, %402 : vector<4x128xf32>
    %c69 = arith.constant 69 : index
    %404 = memref.load %arg2[%c69] : memref<117xf32, #tpu.memory_space<smem>>
    %405 = vector.broadcast %404 : f32 to vector<4x128xf32>
    %406 = arith.mulf %405, %212 : vector<4x128xf32>
    %c70 = arith.constant 70 : index
    %407 = memref.load %arg2[%c70] : memref<117xf32, #tpu.memory_space<smem>>
    %408 = vector.broadcast %407 : f32 to vector<4x128xf32>
    %409 = arith.mulf %408, %199 : vector<4x128xf32>
    %410 = arith.addf %406, %409 : vector<4x128xf32>
    %c71 = arith.constant 71 : index
    %411 = memref.load %arg2[%c71] : memref<117xf32, #tpu.memory_space<smem>>
    %412 = vector.broadcast %411 : f32 to vector<4x128xf32>
    %413 = arith.mulf %412, %204 : vector<4x128xf32>
    %414 = arith.addf %410, %413 : vector<4x128xf32>
    %415 = arith.addf %403, %414 : vector<4x128xf32>
    %c7_49 = arith.constant 7 : index
    %416 = memref.load %arg3[%c7_49] : memref<14xf32, #tpu.memory_space<smem>>
    %417 = vector.broadcast %416 : f32 to vector<4x128xf32>
    %418 = arith.addf %415, %417 : vector<4x128xf32>
    %cst_50 = arith.constant 0.000000e+00 : f32
    %419 = vector.broadcast %cst_50 : f32 to vector<4x128xf32>
    %420 = arith.maximumf %418, %419 : vector<4x128xf32>
    %421 = vector.extract_strided_slice %264 {offsets = [0, 0], sizes = [1, 128], strides = [1, 1]} : vector<4x128xf32> to vector<1x128xf32>
    %422 = vector.extract_strided_slice %264 {offsets = [2, 0], sizes = [1, 128], strides = [1, 1]} : vector<4x128xf32> to vector<1x128xf32>
    %423 = tpu.concatenate %421, %422 in 0 : vector<1x128xf32>, vector<1x128xf32> -> vector<2x128xf32>
    %424 = vector.extract_strided_slice %264 {offsets = [1, 0], sizes = [1, 128], strides = [1, 1]} : vector<4x128xf32> to vector<1x128xf32>
    %425 = vector.extract_strided_slice %264 {offsets = [3, 0], sizes = [1, 128], strides = [1, 1]} : vector<4x128xf32> to vector<1x128xf32>
    %426 = tpu.concatenate %424, %425 in 0 : vector<1x128xf32>, vector<1x128xf32> -> vector<2x128xf32>
    %427 = vector.extract_strided_slice %426 {offsets = [1, 0], sizes = [1, 128], strides = [1, 1]} : vector<2x128xf32> to vector<1x128xf32>
    %c1_i32_51 = arith.constant 1 : i32
    %428 = tpu.dynamic_rotate %427 by %c1_i32_51 dim 1 : vector<1x128xf32>, i32 -> vector<1x128xf32>
    %c0_i32_52 = arith.constant 0 : i32
    %429 = vector.broadcast %c0_i32_52 : i32 to vector<1x128xi32>
    %430 = arith.cmpi eq, %0, %429 : vector<1x128xi32>
    %cst_53 = arith.constant 0.000000e+00 : f32
    %431 = vector.broadcast %cst_53 : f32 to vector<1x128xf32>
    %432 = arith.select %430, %431, %428 : vector<1x128xi1>, vector<1x128xf32>
    %433 = vector.extract_strided_slice %426 {offsets = [0, 0], sizes = [1, 128], strides = [1, 1]} : vector<2x128xf32> to vector<1x128xf32>
    %434 = tpu.concatenate %432, %433 in 0 : vector<1x128xf32>, vector<1x128xf32> -> vector<2x128xf32>
    %435 = vector.extract_strided_slice %316 {offsets = [0, 0], sizes = [1, 128], strides = [1, 1]} : vector<4x128xf32> to vector<1x128xf32>
    %436 = vector.extract_strided_slice %316 {offsets = [2, 0], sizes = [1, 128], strides = [1, 1]} : vector<4x128xf32> to vector<1x128xf32>
    %437 = tpu.concatenate %435, %436 in 0 : vector<1x128xf32>, vector<1x128xf32> -> vector<2x128xf32>
    %438 = vector.extract_strided_slice %316 {offsets = [1, 0], sizes = [1, 128], strides = [1, 1]} : vector<4x128xf32> to vector<1x128xf32>
    %439 = vector.extract_strided_slice %316 {offsets = [3, 0], sizes = [1, 128], strides = [1, 1]} : vector<4x128xf32> to vector<1x128xf32>
    %440 = tpu.concatenate %438, %439 in 0 : vector<1x128xf32>, vector<1x128xf32> -> vector<2x128xf32>
    %441 = vector.extract_strided_slice %440 {offsets = [1, 0], sizes = [1, 128], strides = [1, 1]} : vector<2x128xf32> to vector<1x128xf32>
    %c1_i32_54 = arith.constant 1 : i32
    %442 = tpu.dynamic_rotate %441 by %c1_i32_54 dim 1 : vector<1x128xf32>, i32 -> vector<1x128xf32>
    %c0_i32_55 = arith.constant 0 : i32
    %443 = vector.broadcast %c0_i32_55 : i32 to vector<1x128xi32>
    %444 = arith.cmpi eq, %0, %443 : vector<1x128xi32>
    %cst_56 = arith.constant 0.000000e+00 : f32
    %445 = vector.broadcast %cst_56 : f32 to vector<1x128xf32>
    %446 = arith.select %444, %445, %442 : vector<1x128xi1>, vector<1x128xf32>
    %447 = vector.extract_strided_slice %440 {offsets = [0, 0], sizes = [1, 128], strides = [1, 1]} : vector<2x128xf32> to vector<1x128xf32>
    %448 = tpu.concatenate %446, %447 in 0 : vector<1x128xf32>, vector<1x128xf32> -> vector<2x128xf32>
    %449 = vector.extract_strided_slice %368 {offsets = [0, 0], sizes = [1, 128], strides = [1, 1]} : vector<4x128xf32> to vector<1x128xf32>
    %450 = vector.extract_strided_slice %368 {offsets = [2, 0], sizes = [1, 128], strides = [1, 1]} : vector<4x128xf32> to vector<1x128xf32>
    %451 = tpu.concatenate %449, %450 in 0 : vector<1x128xf32>, vector<1x128xf32> -> vector<2x128xf32>
    %452 = vector.extract_strided_slice %368 {offsets = [1, 0], sizes = [1, 128], strides = [1, 1]} : vector<4x128xf32> to vector<1x128xf32>
    %453 = vector.extract_strided_slice %368 {offsets = [3, 0], sizes = [1, 128], strides = [1, 1]} : vector<4x128xf32> to vector<1x128xf32>
    %454 = tpu.concatenate %452, %453 in 0 : vector<1x128xf32>, vector<1x128xf32> -> vector<2x128xf32>
    %455 = vector.extract_strided_slice %454 {offsets = [1, 0], sizes = [1, 128], strides = [1, 1]} : vector<2x128xf32> to vector<1x128xf32>
    %c1_i32_57 = arith.constant 1 : i32
    %456 = tpu.dynamic_rotate %455 by %c1_i32_57 dim 1 : vector<1x128xf32>, i32 -> vector<1x128xf32>
    %c0_i32_58 = arith.constant 0 : i32
    %457 = vector.broadcast %c0_i32_58 : i32 to vector<1x128xi32>
    %458 = arith.cmpi eq, %0, %457 : vector<1x128xi32>
    %cst_59 = arith.constant 0.000000e+00 : f32
    %459 = vector.broadcast %cst_59 : f32 to vector<1x128xf32>
    %460 = arith.select %458, %459, %456 : vector<1x128xi1>, vector<1x128xf32>
    %461 = vector.extract_strided_slice %454 {offsets = [0, 0], sizes = [1, 128], strides = [1, 1]} : vector<2x128xf32> to vector<1x128xf32>
    %462 = tpu.concatenate %460, %461 in 0 : vector<1x128xf32>, vector<1x128xf32> -> vector<2x128xf32>
    %463 = vector.extract_strided_slice %420 {offsets = [0, 0], sizes = [1, 128], strides = [1, 1]} : vector<4x128xf32> to vector<1x128xf32>
    %464 = vector.extract_strided_slice %420 {offsets = [2, 0], sizes = [1, 128], strides = [1, 1]} : vector<4x128xf32> to vector<1x128xf32>
    %465 = tpu.concatenate %463, %464 in 0 : vector<1x128xf32>, vector<1x128xf32> -> vector<2x128xf32>
    %466 = vector.extract_strided_slice %420 {offsets = [1, 0], sizes = [1, 128], strides = [1, 1]} : vector<4x128xf32> to vector<1x128xf32>
    %467 = vector.extract_strided_slice %420 {offsets = [3, 0], sizes = [1, 128], strides = [1, 1]} : vector<4x128xf32> to vector<1x128xf32>
    %468 = tpu.concatenate %466, %467 in 0 : vector<1x128xf32>, vector<1x128xf32> -> vector<2x128xf32>
    %469 = vector.extract_strided_slice %468 {offsets = [1, 0], sizes = [1, 128], strides = [1, 1]} : vector<2x128xf32> to vector<1x128xf32>
    %c1_i32_60 = arith.constant 1 : i32
    %470 = tpu.dynamic_rotate %469 by %c1_i32_60 dim 1 : vector<1x128xf32>, i32 -> vector<1x128xf32>
    %c0_i32_61 = arith.constant 0 : i32
    %471 = vector.broadcast %c0_i32_61 : i32 to vector<1x128xi32>
    %472 = arith.cmpi eq, %0, %471 : vector<1x128xi32>
    %cst_62 = arith.constant 0.000000e+00 : f32
    %473 = vector.broadcast %cst_62 : f32 to vector<1x128xf32>
    %474 = arith.select %472, %473, %470 : vector<1x128xi1>, vector<1x128xf32>
    %475 = vector.extract_strided_slice %468 {offsets = [0, 0], sizes = [1, 128], strides = [1, 1]} : vector<2x128xf32> to vector<1x128xf32>
    %476 = tpu.concatenate %474, %475 in 0 : vector<1x128xf32>, vector<1x128xf32> -> vector<2x128xf32>
    %c72 = arith.constant 72 : index
    %477 = memref.load %arg2[%c72] : memref<117xf32, #tpu.memory_space<smem>>
    %478 = vector.broadcast %477 : f32 to vector<2x128xf32>
    %479 = arith.mulf %478, %434 : vector<2x128xf32>
    %c73 = arith.constant 73 : index
    %480 = memref.load %arg2[%c73] : memref<117xf32, #tpu.memory_space<smem>>
    %481 = vector.broadcast %480 : f32 to vector<2x128xf32>
    %482 = arith.mulf %481, %423 : vector<2x128xf32>
    %483 = arith.addf %479, %482 : vector<2x128xf32>
    %c74 = arith.constant 74 : index
    %484 = memref.load %arg2[%c74] : memref<117xf32, #tpu.memory_space<smem>>
    %485 = vector.broadcast %484 : f32 to vector<2x128xf32>
    %486 = arith.mulf %485, %426 : vector<2x128xf32>
    %487 = arith.addf %483, %486 : vector<2x128xf32>
    %c75 = arith.constant 75 : index
    %488 = memref.load %arg2[%c75] : memref<117xf32, #tpu.memory_space<smem>>
    %489 = vector.broadcast %488 : f32 to vector<2x128xf32>
    %490 = arith.mulf %489, %448 : vector<2x128xf32>
    %c76 = arith.constant 76 : index
    %491 = memref.load %arg2[%c76] : memref<117xf32, #tpu.memory_space<smem>>
    %492 = vector.broadcast %491 : f32 to vector<2x128xf32>
    %493 = arith.mulf %492, %437 : vector<2x128xf32>
    %494 = arith.addf %490, %493 : vector<2x128xf32>
    %c77 = arith.constant 77 : index
    %495 = memref.load %arg2[%c77] : memref<117xf32, #tpu.memory_space<smem>>
    %496 = vector.broadcast %495 : f32 to vector<2x128xf32>
    %497 = arith.mulf %496, %440 : vector<2x128xf32>
    %498 = arith.addf %494, %497 : vector<2x128xf32>
    %499 = arith.addf %487, %498 : vector<2x128xf32>
    %c78 = arith.constant 78 : index
    %500 = memref.load %arg2[%c78] : memref<117xf32, #tpu.memory_space<smem>>
    %501 = vector.broadcast %500 : f32 to vector<2x128xf32>
    %502 = arith.mulf %501, %462 : vector<2x128xf32>
    %c79 = arith.constant 79 : index
    %503 = memref.load %arg2[%c79] : memref<117xf32, #tpu.memory_space<smem>>
    %504 = vector.broadcast %503 : f32 to vector<2x128xf32>
    %505 = arith.mulf %504, %451 : vector<2x128xf32>
    %506 = arith.addf %502, %505 : vector<2x128xf32>
    %c80 = arith.constant 80 : index
    %507 = memref.load %arg2[%c80] : memref<117xf32, #tpu.memory_space<smem>>
    %508 = vector.broadcast %507 : f32 to vector<2x128xf32>
    %509 = arith.mulf %508, %454 : vector<2x128xf32>
    %510 = arith.addf %506, %509 : vector<2x128xf32>
    %511 = arith.addf %499, %510 : vector<2x128xf32>
    %c81 = arith.constant 81 : index
    %512 = memref.load %arg2[%c81] : memref<117xf32, #tpu.memory_space<smem>>
    %513 = vector.broadcast %512 : f32 to vector<2x128xf32>
    %514 = arith.mulf %513, %476 : vector<2x128xf32>
    %c82 = arith.constant 82 : index
    %515 = memref.load %arg2[%c82] : memref<117xf32, #tpu.memory_space<smem>>
    %516 = vector.broadcast %515 : f32 to vector<2x128xf32>
    %517 = arith.mulf %516, %465 : vector<2x128xf32>
    %518 = arith.addf %514, %517 : vector<2x128xf32>
    %c83 = arith.constant 83 : index
    %519 = memref.load %arg2[%c83] : memref<117xf32, #tpu.memory_space<smem>>
    %520 = vector.broadcast %519 : f32 to vector<2x128xf32>
    %521 = arith.mulf %520, %468 : vector<2x128xf32>
    %522 = arith.addf %518, %521 : vector<2x128xf32>
    %523 = arith.addf %511, %522 : vector<2x128xf32>
    %c8_63 = arith.constant 8 : index
    %524 = memref.load %arg3[%c8_63] : memref<14xf32, #tpu.memory_space<smem>>
    %525 = vector.broadcast %524 : f32 to vector<2x128xf32>
    %526 = arith.addf %523, %525 : vector<2x128xf32>
    %cst_64 = arith.constant 0.000000e+00 : f32
    %527 = vector.broadcast %cst_64 : f32 to vector<2x128xf32>
    %528 = arith.maximumf %526, %527 : vector<2x128xf32>
    %c84 = arith.constant 84 : index
    %529 = memref.load %arg2[%c84] : memref<117xf32, #tpu.memory_space<smem>>
    %530 = vector.broadcast %529 : f32 to vector<2x128xf32>
    %531 = arith.mulf %530, %434 : vector<2x128xf32>
    %c85 = arith.constant 85 : index
    %532 = memref.load %arg2[%c85] : memref<117xf32, #tpu.memory_space<smem>>
    %533 = vector.broadcast %532 : f32 to vector<2x128xf32>
    %534 = arith.mulf %533, %423 : vector<2x128xf32>
    %535 = arith.addf %531, %534 : vector<2x128xf32>
    %c86 = arith.constant 86 : index
    %536 = memref.load %arg2[%c86] : memref<117xf32, #tpu.memory_space<smem>>
    %537 = vector.broadcast %536 : f32 to vector<2x128xf32>
    %538 = arith.mulf %537, %426 : vector<2x128xf32>
    %539 = arith.addf %535, %538 : vector<2x128xf32>
    %c87 = arith.constant 87 : index
    %540 = memref.load %arg2[%c87] : memref<117xf32, #tpu.memory_space<smem>>
    %541 = vector.broadcast %540 : f32 to vector<2x128xf32>
    %542 = arith.mulf %541, %448 : vector<2x128xf32>
    %c88 = arith.constant 88 : index
    %543 = memref.load %arg2[%c88] : memref<117xf32, #tpu.memory_space<smem>>
    %544 = vector.broadcast %543 : f32 to vector<2x128xf32>
    %545 = arith.mulf %544, %437 : vector<2x128xf32>
    %546 = arith.addf %542, %545 : vector<2x128xf32>
    %c89 = arith.constant 89 : index
    %547 = memref.load %arg2[%c89] : memref<117xf32, #tpu.memory_space<smem>>
    %548 = vector.broadcast %547 : f32 to vector<2x128xf32>
    %549 = arith.mulf %548, %440 : vector<2x128xf32>
    %550 = arith.addf %546, %549 : vector<2x128xf32>
    %551 = arith.addf %539, %550 : vector<2x128xf32>
    %c90 = arith.constant 90 : index
    %552 = memref.load %arg2[%c90] : memref<117xf32, #tpu.memory_space<smem>>
    %553 = vector.broadcast %552 : f32 to vector<2x128xf32>
    %554 = arith.mulf %553, %462 : vector<2x128xf32>
    %c91 = arith.constant 91 : index
    %555 = memref.load %arg2[%c91] : memref<117xf32, #tpu.memory_space<smem>>
    %556 = vector.broadcast %555 : f32 to vector<2x128xf32>
    %557 = arith.mulf %556, %451 : vector<2x128xf32>
    %558 = arith.addf %554, %557 : vector<2x128xf32>
    %c92 = arith.constant 92 : index
    %559 = memref.load %arg2[%c92] : memref<117xf32, #tpu.memory_space<smem>>
    %560 = vector.broadcast %559 : f32 to vector<2x128xf32>
    %561 = arith.mulf %560, %454 : vector<2x128xf32>
    %562 = arith.addf %558, %561 : vector<2x128xf32>
    %563 = arith.addf %551, %562 : vector<2x128xf32>
    %c93 = arith.constant 93 : index
    %564 = memref.load %arg2[%c93] : memref<117xf32, #tpu.memory_space<smem>>
    %565 = vector.broadcast %564 : f32 to vector<2x128xf32>
    %566 = arith.mulf %565, %476 : vector<2x128xf32>
    %c94 = arith.constant 94 : index
    %567 = memref.load %arg2[%c94] : memref<117xf32, #tpu.memory_space<smem>>
    %568 = vector.broadcast %567 : f32 to vector<2x128xf32>
    %569 = arith.mulf %568, %465 : vector<2x128xf32>
    %570 = arith.addf %566, %569 : vector<2x128xf32>
    %c95 = arith.constant 95 : index
    %571 = memref.load %arg2[%c95] : memref<117xf32, #tpu.memory_space<smem>>
    %572 = vector.broadcast %571 : f32 to vector<2x128xf32>
    %573 = arith.mulf %572, %468 : vector<2x128xf32>
    %574 = arith.addf %570, %573 : vector<2x128xf32>
    %575 = arith.addf %563, %574 : vector<2x128xf32>
    %c9_65 = arith.constant 9 : index
    %576 = memref.load %arg3[%c9_65] : memref<14xf32, #tpu.memory_space<smem>>
    %577 = vector.broadcast %576 : f32 to vector<2x128xf32>
    %578 = arith.addf %575, %577 : vector<2x128xf32>
    %cst_66 = arith.constant 0.000000e+00 : f32
    %579 = vector.broadcast %cst_66 : f32 to vector<2x128xf32>
    %580 = arith.maximumf %578, %579 : vector<2x128xf32>
    %581 = vector.extract_strided_slice %528 {offsets = [0, 0], sizes = [1, 128], strides = [1, 1]} : vector<2x128xf32> to vector<1x128xf32>
    %582 = vector.extract_strided_slice %528 {offsets = [1, 0], sizes = [1, 128], strides = [1, 1]} : vector<2x128xf32> to vector<1x128xf32>
    %c1_i32_67 = arith.constant 1 : i32
    %583 = tpu.dynamic_rotate %582 by %c1_i32_67 dim 1 : vector<1x128xf32>, i32 -> vector<1x128xf32>
    %c0_i32_68 = arith.constant 0 : i32
    %584 = vector.broadcast %c0_i32_68 : i32 to vector<1x128xi32>
    %585 = arith.cmpi eq, %0, %584 : vector<1x128xi32>
    %cst_69 = arith.constant 0.000000e+00 : f32
    %586 = vector.broadcast %cst_69 : f32 to vector<1x128xf32>
    %587 = arith.select %585, %586, %583 : vector<1x128xi1>, vector<1x128xf32>
    %588 = vector.extract_strided_slice %580 {offsets = [0, 0], sizes = [1, 128], strides = [1, 1]} : vector<2x128xf32> to vector<1x128xf32>
    %589 = vector.extract_strided_slice %580 {offsets = [1, 0], sizes = [1, 128], strides = [1, 1]} : vector<2x128xf32> to vector<1x128xf32>
    %c1_i32_70 = arith.constant 1 : i32
    %590 = tpu.dynamic_rotate %589 by %c1_i32_70 dim 1 : vector<1x128xf32>, i32 -> vector<1x128xf32>
    %c0_i32_71 = arith.constant 0 : i32
    %591 = vector.broadcast %c0_i32_71 : i32 to vector<1x128xi32>
    %592 = arith.cmpi eq, %0, %591 : vector<1x128xi32>
    %cst_72 = arith.constant 0.000000e+00 : f32
    %593 = vector.broadcast %cst_72 : f32 to vector<1x128xf32>
    %594 = arith.select %592, %593, %590 : vector<1x128xi1>, vector<1x128xf32>
    %c96 = arith.constant 96 : index
    %595 = memref.load %arg2[%c96] : memref<117xf32, #tpu.memory_space<smem>>
    %596 = vector.broadcast %595 : f32 to vector<1x128xf32>
    %597 = arith.mulf %596, %587 : vector<1x128xf32>
    %c97 = arith.constant 97 : index
    %598 = memref.load %arg2[%c97] : memref<117xf32, #tpu.memory_space<smem>>
    %599 = vector.broadcast %598 : f32 to vector<1x128xf32>
    %600 = arith.mulf %599, %581 : vector<1x128xf32>
    %601 = arith.addf %597, %600 : vector<1x128xf32>
    %c98 = arith.constant 98 : index
    %602 = memref.load %arg2[%c98] : memref<117xf32, #tpu.memory_space<smem>>
    %603 = vector.broadcast %602 : f32 to vector<1x128xf32>
    %604 = arith.mulf %603, %582 : vector<1x128xf32>
    %605 = arith.addf %601, %604 : vector<1x128xf32>
    %c99 = arith.constant 99 : index
    %606 = memref.load %arg2[%c99] : memref<117xf32, #tpu.memory_space<smem>>
    %607 = vector.broadcast %606 : f32 to vector<1x128xf32>
    %608 = arith.mulf %607, %594 : vector<1x128xf32>
    %c100 = arith.constant 100 : index
    %609 = memref.load %arg2[%c100] : memref<117xf32, #tpu.memory_space<smem>>
    %610 = vector.broadcast %609 : f32 to vector<1x128xf32>
    %611 = arith.mulf %610, %588 : vector<1x128xf32>
    %612 = arith.addf %608, %611 : vector<1x128xf32>
    %c101 = arith.constant 101 : index
    %613 = memref.load %arg2[%c101] : memref<117xf32, #tpu.memory_space<smem>>
    %614 = vector.broadcast %613 : f32 to vector<1x128xf32>
    %615 = arith.mulf %614, %589 : vector<1x128xf32>
    %616 = arith.addf %612, %615 : vector<1x128xf32>
    %617 = arith.addf %605, %616 : vector<1x128xf32>
    %c10_73 = arith.constant 10 : index
    %618 = memref.load %arg3[%c10_73] : memref<14xf32, #tpu.memory_space<smem>>
    %619 = vector.broadcast %618 : f32 to vector<1x128xf32>
    %620 = arith.addf %617, %619 : vector<1x128xf32>
    %cst_74 = arith.constant 0.000000e+00 : f32
    %621 = vector.broadcast %cst_74 : f32 to vector<1x128xf32>
    %622 = arith.maximumf %620, %621 : vector<1x128xf32>
    %c102 = arith.constant 102 : index
    %623 = memref.load %arg2[%c102] : memref<117xf32, #tpu.memory_space<smem>>
    %624 = vector.broadcast %623 : f32 to vector<1x128xf32>
    %625 = arith.mulf %624, %587 : vector<1x128xf32>
    %c103 = arith.constant 103 : index
    %626 = memref.load %arg2[%c103] : memref<117xf32, #tpu.memory_space<smem>>
    %627 = vector.broadcast %626 : f32 to vector<1x128xf32>
    %628 = arith.mulf %627, %581 : vector<1x128xf32>
    %629 = arith.addf %625, %628 : vector<1x128xf32>
    %c104 = arith.constant 104 : index
    %630 = memref.load %arg2[%c104] : memref<117xf32, #tpu.memory_space<smem>>
    %631 = vector.broadcast %630 : f32 to vector<1x128xf32>
    %632 = arith.mulf %631, %582 : vector<1x128xf32>
    %633 = arith.addf %629, %632 : vector<1x128xf32>
    %c105 = arith.constant 105 : index
    %634 = memref.load %arg2[%c105] : memref<117xf32, #tpu.memory_space<smem>>
    %635 = vector.broadcast %634 : f32 to vector<1x128xf32>
    %636 = arith.mulf %635, %594 : vector<1x128xf32>
    %c106 = arith.constant 106 : index
    %637 = memref.load %arg2[%c106] : memref<117xf32, #tpu.memory_space<smem>>
    %638 = vector.broadcast %637 : f32 to vector<1x128xf32>
    %639 = arith.mulf %638, %588 : vector<1x128xf32>
    %640 = arith.addf %636, %639 : vector<1x128xf32>
    %c107 = arith.constant 107 : index
    %641 = memref.load %arg2[%c107] : memref<117xf32, #tpu.memory_space<smem>>
    %642 = vector.broadcast %641 : f32 to vector<1x128xf32>
    %643 = arith.mulf %642, %589 : vector<1x128xf32>
    %644 = arith.addf %640, %643 : vector<1x128xf32>
    %645 = arith.addf %633, %644 : vector<1x128xf32>
    %c11_75 = arith.constant 11 : index
    %646 = memref.load %arg3[%c11_75] : memref<14xf32, #tpu.memory_space<smem>>
    %647 = vector.broadcast %646 : f32 to vector<1x128xf32>
    %648 = arith.addf %645, %647 : vector<1x128xf32>
    %cst_76 = arith.constant 0.000000e+00 : f32
    %649 = vector.broadcast %cst_76 : f32 to vector<1x128xf32>
    %650 = arith.maximumf %648, %649 : vector<1x128xf32>
    %c0_i32_77 = arith.constant 0 : i32
    %651 = vector.broadcast %c0_i32_77 : i32 to vector<1x128xi32>
    %652 = arith.cmpi eq, %0, %651 : vector<1x128xi32>
    %c1_i32_78 = arith.constant 1 : i32
    %653 = tpu.dynamic_rotate %622 by %c1_i32_78 dim 1 : vector<1x128xf32>, i32 -> vector<1x128xf32>
    %cst_79 = arith.constant 0.000000e+00 : f32
    %654 = vector.broadcast %cst_79 : f32 to vector<1x128xf32>
    %655 = arith.select %652, %654, %653 : vector<1x128xi1>, vector<1x128xf32>
    %c127_i32 = arith.constant 127 : i32
    %656 = tpu.dynamic_rotate %622 by %c127_i32 dim 1 : vector<1x128xf32>, i32 -> vector<1x128xf32>
    %c108 = arith.constant 108 : index
    %657 = memref.load %arg2[%c108] : memref<117xf32, #tpu.memory_space<smem>>
    %658 = vector.broadcast %657 : f32 to vector<1x128xf32>
    %659 = arith.mulf %658, %655 : vector<1x128xf32>
    %c109 = arith.constant 109 : index
    %660 = memref.load %arg2[%c109] : memref<117xf32, #tpu.memory_space<smem>>
    %661 = vector.broadcast %660 : f32 to vector<1x128xf32>
    %662 = arith.mulf %661, %622 : vector<1x128xf32>
    %663 = arith.addf %659, %662 : vector<1x128xf32>
    %c110 = arith.constant 110 : index
    %664 = memref.load %arg2[%c110] : memref<117xf32, #tpu.memory_space<smem>>
    %665 = vector.broadcast %664 : f32 to vector<1x128xf32>
    %666 = arith.mulf %665, %656 : vector<1x128xf32>
    %667 = arith.addf %663, %666 : vector<1x128xf32>
    %c0_i32_80 = arith.constant 0 : i32
    %668 = vector.broadcast %c0_i32_80 : i32 to vector<1x128xi32>
    %669 = arith.cmpi eq, %0, %668 : vector<1x128xi32>
    %c1_i32_81 = arith.constant 1 : i32
    %670 = tpu.dynamic_rotate %650 by %c1_i32_81 dim 1 : vector<1x128xf32>, i32 -> vector<1x128xf32>
    %cst_82 = arith.constant 0.000000e+00 : f32
    %671 = vector.broadcast %cst_82 : f32 to vector<1x128xf32>
    %672 = arith.select %669, %671, %670 : vector<1x128xi1>, vector<1x128xf32>
    %c127_i32_83 = arith.constant 127 : i32
    %673 = tpu.dynamic_rotate %650 by %c127_i32_83 dim 1 : vector<1x128xf32>, i32 -> vector<1x128xf32>
    %c111 = arith.constant 111 : index
    %674 = memref.load %arg2[%c111] : memref<117xf32, #tpu.memory_space<smem>>
    %675 = vector.broadcast %674 : f32 to vector<1x128xf32>
    %676 = arith.mulf %675, %672 : vector<1x128xf32>
    %c112 = arith.constant 112 : index
    %677 = memref.load %arg2[%c112] : memref<117xf32, #tpu.memory_space<smem>>
    %678 = vector.broadcast %677 : f32 to vector<1x128xf32>
    %679 = arith.mulf %678, %650 : vector<1x128xf32>
    %680 = arith.addf %676, %679 : vector<1x128xf32>
    %c113 = arith.constant 113 : index
    %681 = memref.load %arg2[%c113] : memref<117xf32, #tpu.memory_space<smem>>
    %682 = vector.broadcast %681 : f32 to vector<1x128xf32>
    %683 = arith.mulf %682, %673 : vector<1x128xf32>
    %684 = arith.addf %680, %683 : vector<1x128xf32>
    %685 = arith.addf %667, %684 : vector<1x128xf32>
    %c12_84 = arith.constant 12 : index
    %686 = memref.load %arg3[%c12_84] : memref<14xf32, #tpu.memory_space<smem>>
    %687 = vector.broadcast %686 : f32 to vector<1x128xf32>
    %688 = arith.addf %685, %687 : vector<1x128xf32>
    %cst_85 = arith.constant 0.000000e+00 : f32
    %689 = vector.broadcast %cst_85 : f32 to vector<1x128xf32>
    %690 = arith.maximumf %688, %689 : vector<1x128xf32>
    %c2_i32 = arith.constant 2 : i32
    %691 = vector.broadcast %c2_i32 : i32 to vector<1x128xi32>
    %692 = arith.cmpi slt, %0, %691 : vector<1x128xi32>
    %c2_i32_86 = arith.constant 2 : i32
    %693 = tpu.dynamic_rotate %690 by %c2_i32_86 dim 1 : vector<1x128xf32>, i32 -> vector<1x128xf32>
    %cst_87 = arith.constant 0.000000e+00 : f32
    %694 = vector.broadcast %cst_87 : f32 to vector<1x128xf32>
    %695 = arith.select %692, %694, %693 : vector<1x128xi1>, vector<1x128xf32>
    %c126_i32 = arith.constant 126 : i32
    %696 = tpu.dynamic_rotate %690 by %c126_i32 dim 1 : vector<1x128xf32>, i32 -> vector<1x128xf32>
    %c114 = arith.constant 114 : index
    %697 = memref.load %arg2[%c114] : memref<117xf32, #tpu.memory_space<smem>>
    %698 = vector.broadcast %697 : f32 to vector<1x128xf32>
    %699 = arith.mulf %698, %695 : vector<1x128xf32>
    %c115 = arith.constant 115 : index
    %700 = memref.load %arg2[%c115] : memref<117xf32, #tpu.memory_space<smem>>
    %701 = vector.broadcast %700 : f32 to vector<1x128xf32>
    %702 = arith.mulf %701, %690 : vector<1x128xf32>
    %703 = arith.addf %699, %702 : vector<1x128xf32>
    %c116 = arith.constant 116 : index
    %704 = memref.load %arg2[%c116] : memref<117xf32, #tpu.memory_space<smem>>
    %705 = vector.broadcast %704 : f32 to vector<1x128xf32>
    %706 = arith.mulf %705, %696 : vector<1x128xf32>
    %707 = arith.addf %703, %706 : vector<1x128xf32>
    %c13_88 = arith.constant 13 : index
    %708 = memref.load %arg3[%c13_88] : memref<14xf32, #tpu.memory_space<smem>>
    %709 = vector.broadcast %708 : f32 to vector<1x128xf32>
    %710 = arith.addf %707, %709 : vector<1x128xf32>
    %cst_89 = arith.constant 0.000000e+00 : f32
    %711 = vector.broadcast %cst_89 : f32 to vector<1x128xf32>
    %712 = arith.maximumf %710, %711 : vector<1x128xf32>
    %c0_90 = arith.constant 0 : index
    %c0_91 = arith.constant 0 : index
    %713 = vector.load %arg4[%c0_90, %c0_91] : memref<128x8xf32, #tpu.memory_space<vmem>>, vector<128x8xf32>
    %cst_92 = arith.constant dense<0.000000e+00> : vector<1x8xf32>
    %714 = tpu.matmul %712, %713, %cst_92 {dimension_numbers = #tpu.dot_dimension_numbers<[1], [0], [0], [1], [0, 0, 1, 1], [], []>} : vector<1x128xf32>, vector<128x8xf32>, vector<1x8xf32> -> vector<1x8xf32>
    %c0_93 = arith.constant 0 : index
    %c0_94 = arith.constant 0 : index
    %715 = vector.load %arg7[%c0_93, %c0_94] : memref<2x8xf32, #tpu.memory_space<vmem>>, vector<1x8xf32>
    %716 = arith.addf %714, %715 : vector<1x8xf32>
    %cst_95 = arith.constant 0.000000e+00 : f32
    %717 = vector.broadcast %cst_95 : f32 to vector<1x8xf32>
    %718 = arith.maximumf %716, %717 : vector<1x8xf32>
    %c0_96 = arith.constant 0 : index
    %c0_97 = arith.constant 0 : index
    %719 = vector.load %arg5[%c0_96, %c0_97] : memref<8x8xf32, #tpu.memory_space<vmem>>, vector<8x8xf32>
    %cst_98 = arith.constant dense<0.000000e+00> : vector<1x8xf32>
    %720 = tpu.matmul %718, %719, %cst_98 {dimension_numbers = #tpu.dot_dimension_numbers<[1], [0], [0], [1], [0, 0, 1, 1], [], []>} : vector<1x8xf32>, vector<8x8xf32>, vector<1x8xf32> -> vector<1x8xf32>
    %c1_99 = arith.constant 1 : index
    %c0_100 = arith.constant 0 : index
    %721 = vector.load %arg7[%c1_99, %c0_100] : memref<2x8xf32, #tpu.memory_space<vmem>>, vector<1x8xf32>
    %722 = arith.addf %720, %721 : vector<1x8xf32>
    %cst_101 = arith.constant 0.000000e+00 : f32
    %723 = vector.broadcast %cst_101 : f32 to vector<1x8xf32>
    %724 = arith.maximumf %722, %723 : vector<1x8xf32>
    %c0_102 = arith.constant 0 : index
    %c0_103 = arith.constant 0 : index
    %725 = vector.load %arg6[%c0_102, %c0_103] : memref<8x1xf32, #tpu.memory_space<vmem>>, vector<8x1xf32>
    %cst_104 = arith.constant dense<0.000000e+00> : vector<1x1xf32>
    %726 = tpu.matmul %724, %725, %cst_104 {dimension_numbers = #tpu.dot_dimension_numbers<[1], [0], [0], [1], [0, 0, 1, 1], [], []>} : vector<1x8xf32>, vector<8x1xf32>, vector<1x1xf32> -> vector<1x1xf32>
    %727 = vector.shape_cast %726 : vector<1x1xf32> to vector<1x1x1xf32>
    %728 = vector.shape_cast %727 : vector<1x1x1xf32> to vector<1x1x1xf32>
    %729 = vector.broadcast %728 : vector<1x1x1xf32> to vector<1x8x128xf32>
    %c0_105 = arith.constant 0 : index
    %c0_106 = arith.constant 0 : index
    %c0_107 = arith.constant 0 : index
    %730 = vector.load %arg8[%c0_105, %c0_106, %c0_107] : memref<1x8x128xf32, #tpu.memory_space<vmem>>, vector<1x8x128xf32>
    tpu.vector_store %arg8[%c0_105, %c0_106, %c0_107], %729 {strides = array<i32>} : memref<1x8x128xf32, #tpu.memory_space<vmem>>, vector<1x8x128xf32>,
    return
  }
  func.func @transform_0(%arg0: i32) -> (i32, i32, i32) {
    %c0_i32 = arith.constant 0 : i32
    %c0_i32_0 = arith.constant 0 : i32
    %c0_i32_1 = arith.constant 0 : i32
    return %arg0, %c0_i32, %c0_i32_0 : i32, i32, i32
  }
  func.func @transform_1(%arg0: i32) -> i32 {
    %c0_i32 = arith.constant 0 : i32
    %c0_i32_0 = arith.constant 0 : i32
    return %c0_i32 : i32
  }
  func.func @transform_2(%arg0: i32) -> i32 {
    %c0_i32 = arith.constant 0 : i32
    %c0_i32_0 = arith.constant 0 : i32
    return %c0_i32 : i32
  }
  func.func @transform_3(%arg0: i32) -> (i32, i32) {
    %c0_i32 = arith.constant 0 : i32
    %c0_i32_0 = arith.constant 0 : i32
    %c0_i32_1 = arith.constant 0 : i32
    return %c0_i32, %c0_i32_0 : i32, i32
  }
  func.func @transform_4(%arg0: i32) -> (i32, i32) {
    %c0_i32 = arith.constant 0 : i32
    %c0_i32_0 = arith.constant 0 : i32
    %c0_i32_1 = arith.constant 0 : i32
    return %c0_i32, %c0_i32_0 : i32, i32
  }
  func.func @transform_5(%arg0: i32) -> (i32, i32) {
    %c0_i32 = arith.constant 0 : i32
    %c0_i32_0 = arith.constant 0 : i32
    %c0_i32_1 = arith.constant 0 : i32
    return %c0_i32, %c0_i32_0 : i32, i32
  }
  func.func @transform_6(%arg0: i32) -> (i32, i32) {
    %c0_i32 = arith.constant 0 : i32
    %c0_i32_0 = arith.constant 0 : i32
    %c0_i32_1 = arith.constant 0 : i32
    return %c0_i32, %c0_i32_0 : i32, i32
  }
  func.func @transform_7(%arg0: i32) -> (i32, i32, i32) {
    %c0_i32 = arith.constant 0 : i32
    %c0_i32_0 = arith.constant 0 : i32
    %c0_i32_1 = arith.constant 0 : i32
    return %arg0, %c0_i32, %c0_i32_0 : i32, i32, i32
  }
}

</mosaic_0001>

<llo_original>
// kernel: tiniernet_forward.1
$region0: #{tiniernet_forward.1}
  #allocation0 [shape = 'u32[]', space=smem, size = 0x4, offset = 0x4, fixed_abs, tag = 'smem constant byte address 0x4 - core index']
  #allocation1 [shape = 'u32[144,128]{1,0:T(1,128)}', space=vmem, size = 0x12000, scoped, tag = 'internal scratch']
  %s0 = inlined_call_operand.vmem [shape: f32[4,16,128], index: 0, kind: input, shape index: {}]
  %s1 = inlined_call_operand.vmem [shape: f32[117], index: 1, kind: input, shape index: {}]
  %s2 = inlined_call_operand.vmem [shape: f32[14], index: 2, kind: input, shape index: {}]
  %s3 = inlined_call_operand.vmem [shape: f32[128,8], index: 3, kind: input, shape index: {}]
  %s4 = inlined_call_operand.vmem [shape: f32[8,8], index: 4, kind: input, shape index: {}]
  %s5 = inlined_call_operand.vmem [shape: f32[8,1], index: 5, kind: input, shape index: {}]
  %s6 = inlined_call_operand.vmem [shape: f32[2,8], index: 6, kind: input, shape index: {}]
  %s7 = inlined_call_operand.vmem [shape: f32[2,8,128], index: 7, kind: output, shape index: {}]
  %s8 = sld [smem:[#allocation0]]
  $region69: #{tiniernet_forward.1} parent=0
    _
  %s10 = ssub.s32 1, %s8
  %s11 = scalar_select 0, %s10, %s8
  $region1: #{tiniernet_forward.1} parent=0
    #allocation2 [shape = 'u8[512]{0}', space=smem, size = 0x200, scoped, tag = 'input window, operand 1, single buffered']
    #allocation3 [shape = 's32[2]{0}', space=sflag, size = 0x8, scoped, tag = 'scoped memory for tiniernet_forward.1']
    #allocation4 [shape = 'u8[512]{0}', space=smem, size = 0x200, scoped, tag = 'input window, operand 2, single buffered']
    #allocation5 [shape = 's32[1]{0}', space=sflag, size = 0x4, scoped, tag = 'scoped memory for tiniernet_forward.1']
    %12 = vsyncpa [#allocation3], 0
    %13 = vsyncpa [#allocation5], 0
    loop: start=0, step=1, limit=4
    $region2: #{tiniernet_forward.1} parent=1 // loop_pre_header
      _
    $region3: #{tiniernet_forward.1} parent=1 // loop_header
      %s15 = sphi 0, %s19
      %p16 = scmp.ge.s32.totalorder %s15, 4
      %s25 = sphi 0, %s27
      %s28 = sphi 0, %s25
      %s29 = sphi 0, %s28
      %s45 = sphi 0, %s29
      %s49 = sphi 0, %s49
      %s51 = sphi 0, %s49
      %s52 = sphi 0, %s51
      %s66 = sphi 0, %s52
      %s70 = sphi 0, %s70
      %s72 = sphi 0, %s70
      %s73 = sphi 0, %s72
      %s87 = sphi 0, %s73
      %s91 = sphi 0, %s91
      %s93 = sphi 0, %s91
      %s94 = sphi 0, %s93
      %s108 = sphi 0, %s94
      %s112 = sphi 0, %s112
      %s114 = sphi 0, %s112
      %s115 = sphi 0, %s114
      %s129 = sphi 0, %s115
      %s133 = sphi 0, %s133
      %s135 = sphi 0, %s133
      %s136 = sphi 0, %s135
      %s150 = sphi 0, %s136
      %s154 = sphi 0, %s154
      %s156 = sphi 0, %s154
      %s157 = sphi 0, %s156
      %s171 = sphi 0, %s157
      %s177 = sphi 0, %s179
      %s180 = sphi 0, %s177
      %s181 = sphi 0, %s180
      %s197 = sphi 0, %s181
    $region4: #{tiniernet_forward.1} parent=1 // loop_header_branch
      %18 = sbr.rel (%p16) target = $region8
    $region5: #{tiniernet_forward.1} parent=1 // loop_body
      %s20 = ssub.s32 %s15, 1
      %s21 = ssub.s32 %s15, 2
      %s22 = sadd.s32 %s15, 1
      %s23 = ssub.s32 %s15, %s22
      %p24 = scmp.eq.s32.totalorder %s23, 0
      %s26 = sadd.s32 %s25, 1
      %s27 = scalar_select %p24, %s25, %s26
      %p30 = pneg %p24
      %p31 = scmp.eq.s32.totalorder %s15, 1
      %p32 = por %p30, %p31
      %p33 = scmp.ne.s32.totalorder %s25, %s28
      %p34 = scmp.eq.s32.totalorder %s15, 0
      %p35 = por %p33, %p34
      %p36 = scmp.ne.s32.totalorder %s25, %s28
      %p37 = scmp.eq.s32.totalorder %s20, 1
      %p38 = por %p36, %p37
      %p39 = scmp.ne.s32.totalorder %s28, %s29
      %p40 = scmp.eq.s32.totalorder %s20, 0
      %p41 = por %p39, %p40
      %p42 = scmp.ne.s32.totalorder %s28, %s29
      %p43 = scmp.eq.s32.totalorder %s21, 1
      %p44 = por %p42, %p43
      %p46 = scmp.ne.s32.totalorder %s29, %s45
      %p47 = scmp.eq.s32.totalorder %s21, 0
      %p48 = por %p46, %p47
      %s50 = sadd.s32 %s49, 1
      %p53 = scmp.eq.s32.totalorder %s15, 1
      %p54 = scmp.ne.s32.totalorder %s49, %s51
      %p55 = scmp.eq.s32.totalorder %s15, 0
      %p56 = por %p54, %p55
      %p57 = scmp.ne.s32.totalorder %s49, %s51
      %p58 = scmp.eq.s32.totalorder %s20, 1
      %p59 = por %p57, %p58
      %p60 = scmp.ne.s32.totalorder %s51, %s52
      %p61 = scmp.eq.s32.totalorder %s20, 0
      %p62 = por %p60, %p61
      %p63 = scmp.ne.s32.totalorder %s51, %s52
      %p64 = scmp.eq.s32.totalorder %s21, 1
      %p65 = por %p63, %p64
      %p67 = scmp.ne.s32.totalorder %s52, %s66
      %p68 = scmp.eq.s32.totalorder %s21, 0
      %p69 = por %p67, %p68
      %s71 = sadd.s32 %s70, 1
      %p74 = scmp.eq.s32.totalorder %s15, 1
      %p75 = scmp.ne.s32.totalorder %s70, %s72
      %p76 = scmp.eq.s32.totalorder %s15, 0
      %p77 = por %p75, %p76
      %p78 = scmp.ne.s32.totalorder %s70, %s72
      %p79 = scmp.eq.s32.totalorder %s20, 1
      %p80 = por %p78, %p79
      %p81 = scmp.ne.s32.totalorder %s72, %s73
      %p82 = scmp.eq.s32.totalorder %s20, 0
      %p83 = por %p81, %p82
      %p84 = scmp.ne.s32.totalorder %s72, %s73
      %p85 = scmp.eq.s32.totalorder %s21, 1
      %p86 = por %p84, %p85
      %p88 = scmp.ne.s32.totalorder %s73, %s87
      %p89 = scmp.eq.s32.totalorder %s21, 0
      %p90 = por %p88, %p89
      %s92 = sadd.s32 %s91, 1
      %p95 = scmp.eq.s32.totalorder %s15, 1
      %p96 = scmp.ne.s32.totalorder %s91, %s93
      %p97 = scmp.eq.s32.totalorder %s15, 0
      %p98 = por %p96, %p97
      %p99 = scmp.ne.s32.totalorder %s91, %s93
      %p100 = scmp.eq.s32.totalorder %s20, 1
      %p101 = por %p99, %p100
      %p102 = scmp.ne.s32.totalorder %s93, %s94
      %p103 = scmp.eq.s32.totalorder %s20, 0
      %p104 = por %p102, %p103
      %p105 = scmp.ne.s32.totalorder %s93, %s94
      %p106 = scmp.eq.s32.totalorder %s21, 1
      %p107 = por %p105, %p106
      %p109 = scmp.ne.s32.totalorder %s94, %s108
      %p110 = scmp.eq.s32.totalorder %s21, 0
      %p111 = por %p109, %p110
      %s113 = sadd.s32 %s112, 1
      %p116 = scmp.eq.s32.totalorder %s15, 1
      %p117 = scmp.ne.s32.totalorder %s112, %s114
      %p118 = scmp.eq.s32.totalorder %s15, 0
      %p119 = por %p117, %p118
      %p120 = scmp.ne.s32.totalorder %s112, %s114
      %p121 = scmp.eq.s32.totalorder %s20, 1
      %p122 = por %p120, %p121
      %p123 = scmp.ne.s32.totalorder %s114, %s115
      %p124 = scmp.eq.s32.totalorder %s20, 0
      %p125 = por %p123, %p124
      %p126 = scmp.ne.s32.totalorder %s114, %s115
      %p127 = scmp.eq.s32.totalorder %s21, 1
      %p128 = por %p126, %p127
      %p130 = scmp.ne.s32.totalorder %s115, %s129
      %p131 = scmp.eq.s32.totalorder %s21, 0
      %p132 = por %p130, %p131
      %s134 = sadd.s32 %s133, 1
      %p137 = scmp.eq.s32.totalorder %s15, 1
      %p138 = scmp.ne.s32.totalorder %s133, %s135
      %p139 = scmp.eq.s32.totalorder %s15, 0
      %p140 = por %p138, %p139
      %p141 = scmp.ne.s32.totalorder %s133, %s135
      %p142 = scmp.eq.s32.totalorder %s20, 1
      %p143 = por %p141, %p142
      %p144 = scmp.ne.s32.totalorder %s135, %s136
      %p145 = scmp.eq.s32.totalorder %s20, 0
      %p146 = por %p144, %p145
      %p147 = scmp.ne.s32.totalorder %s135, %s136
      %p148 = scmp.eq.s32.totalorder %s21, 1
      %p149 = por %p147, %p148
      %p151 = scmp.ne.s32.totalorder %s136, %s150
      %p152 = scmp.eq.s32.totalorder %s21, 0
      %p153 = por %p151, %p152
      %s155 = sadd.s32 %s154, 1
      %p158 = scmp.eq.s32.totalorder %s15, 1
      %p159 = scmp.ne.s32.totalorder %s154, %s156
      %p160 = scmp.eq.s32.totalorder %s15, 0
      %p161 = por %p159, %p160
      %p162 = scmp.ne.s32.totalorder %s154, %s156
      %p163 = scmp.eq.s32.totalorder %s20, 1
      %p164 = por %p162, %p163
      %p165 = scmp.ne.s32.totalorder %s156, %s157
      %p166 = scmp.eq.s32.totalorder %s20, 0
      %p167 = por %p165, %p166
      %p168 = scmp.ne.s32.totalorder %s156, %s157
      %p169 = scmp.eq.s32.totalorder %s21, 1
      %p170 = por %p168, %p169
      %p172 = scmp.ne.s32.totalorder %s157, %s171
      %p173 = scmp.eq.s32.totalorder %s21, 0
      %p174 = por %p172, %p173
      %s175 = ssub.s32 %s15, %s22
      %p176 = scmp.eq.s32.totalorder %s175, 0
      %s178 = sadd.s32 %s177, 1
      %s179 = scalar_select %p176, %s177, %s178
      %p182 = pneg %p176
      %p183 = scmp.eq.s32.totalorder %s15, 1
      %p184 = por %p182, %p183
      %p185 = scmp.ne.s32.totalorder %s177, %s180
      %p186 = scmp.eq.s32.totalorder %s15, 0
      %p187 = por %p185, %p186
      %p188 = scmp.ne.s32.totalorder %s177, %s180
      %p189 = scmp.eq.s32.totalorder %s20, 1
      %p190 = por %p188, %p189
      %p191 = scmp.ne.s32.totalorder %s180, %s181
      %p192 = scmp.eq.s32.totalorder %s20, 0
      %p193 = por %p191, %p192
      %p194 = scmp.ne.s32.totalorder %s180, %s181
      %p195 = scmp.eq.s32.totalorder %s21, 1
      %p196 = por %p194, %p195
      %p198 = scmp.ne.s32.totalorder %s181, %s197
      %p199 = scmp.eq.s32.totalorder %s21, 0
      %p200 = por %p198, %p199
      %p201 = scmp.le.s32.totalorder 1, %s15
      %p202 = scmp.lt.s32.totalorder %s15, 3
      %p203 = pnand %p201, %p202
      %p204 = pneg %p203
      // Predicated region
      $region9: #{tiniernet_forward.1} parent=5 // pred_check
        _
      $region10: #{tiniernet_forward.1} parent=5 // pred_check_branch
        %206 = sbr.rel (%p203) target = $region12
      $region11: #{tiniernet_forward.1} parent=5 // pred_region
        %s207 = ssub.s32 %s15, 1
        // Predicated region
        $region13: #{tiniernet_forward.1} parent=11 // pred_check
          %p208 = pneg %p62
        $region14: #{tiniernet_forward.1} parent=11 // pred_check_branch
          %210 = sbr.rel (%p208) target = $region16
        $region15: #{tiniernet_forward.1} parent=11 // pred_region
          %s212 = ssub.s32 16, 16
          %213 = vsyncadd [#allocation3], %s212
          %s215 = sshll.u32 %s1, 4
          %s216 = int_to_ptr.vmem [resolvable:$true] %s215
          %218 = dma.vmem_to_smem %s216, 16, [#allocation2], [#allocation3]
        $region16: #{tiniernet_forward.1} parent=11 // pred_fallthru
          _
        // Predicated region
        $region17: #{tiniernet_forward.1} parent=11 // pred_check
          %p219 = pneg %p83
        $region18: #{tiniernet_forward.1} parent=11 // pred_check_branch
          %221 = sbr.rel (%p219) target = $region20
        $region19: #{tiniernet_forward.1} parent=11 // pred_region
          %s223 = ssub.s32 16, 16
          %224 = vsyncadd [#allocation5], %s223
          %s226 = sshll.u32 %s2, 4
          %s227 = int_to_ptr.vmem [resolvable:$true] %s226
          %229 = dma.vmem_to_smem %s227, 16, [#allocation4], [#allocation5]
        $region20: #{tiniernet_forward.1} parent=11 // pred_fallthru
          _
        // Predicated region
        $region21: #{tiniernet_forward.1} parent=11 // pred_check
          %p230 = pneg %p104
        $region22: #{tiniernet_forward.1} parent=11 // pred_check_branch
          %232 = sbr.rel (%p230) target = $region24
        $region23: #{tiniernet_forward.1} parent=11 // pred_region
          _
        $region24: #{tiniernet_forward.1} parent=11 // pred_fallthru
          _
        // Predicated region
        $region25: #{tiniernet_forward.1} parent=11 // pred_check
          %p233 = pneg %p125
        $region26: #{tiniernet_forward.1} parent=11 // pred_check_branch
          %235 = sbr.rel (%p233) target = $region28
        $region27: #{tiniernet_forward.1} parent=11 // pred_region
          _
        $region28: #{tiniernet_forward.1} parent=11 // pred_fallthru
          _
        // Predicated region
        $region29: #{tiniernet_forward.1} parent=11 // pred_check
          %p236 = pneg %p146
        $region30: #{tiniernet_forward.1} parent=11 // pred_check_branch
          %238 = sbr.rel (%p236) target = $region32
        $region31: #{tiniernet_forward.1} parent=11 // pred_region
          _
        $region32: #{tiniernet_forward.1} parent=11 // pred_fallthru
          _
        // Predicated region
        $region33: #{tiniernet_forward.1} parent=11 // pred_check
          %p239 = pneg %p167
        $region34: #{tiniernet_forward.1} parent=11 // pred_check_branch
          %241 = sbr.rel (%p239) target = $region36
        $region35: #{tiniernet_forward.1} parent=11 // pred_region
          _
        $region36: #{tiniernet_forward.1} parent=11 // pred_fallthru
          _
      $region12: #{tiniernet_forward.1} parent=5 // pred_fallthru
        _
      %p242 = scmp.lt.s32.totalorder %s15, 2
      // Predicated region
      $region37: #{tiniernet_forward.1} parent=5 // pred_check
        %p243 = pneg %p242
      $region38: #{tiniernet_forward.1} parent=5 // pred_check_branch
        %245 = sbr.rel (%p243) target = $region40
      $region39: #{tiniernet_forward.1} parent=5 // pred_region
        // Predicated region
        $region41: #{tiniernet_forward.1} parent=39 // pred_check
          %p246 = pneg %p35
        $region42: #{tiniernet_forward.1} parent=39 // pred_check_branch
          %248 = sbr.rel (%p246) target = $region44
        $region43: #{tiniernet_forward.1} parent=39 // pred_region
          %s249 = smul.u32 2, %s15
          %p250 = scmp.lt.s32.totalorder %s249, 3
          %s251 = scalar_select %p250, %s249, 3
          %s252 = smul.addr %s251, 2
          %s253 = smul.addr %s252, 8
          %s254 = scalar_lea.vmem %s0, %s253
          %s255 = smul.u32 2, %s15
        $region44: #{tiniernet_forward.1} parent=39 // pred_fallthru
          _
      $region40: #{tiniernet_forward.1} parent=5 // pred_fallthru
        _
      %p256 = scmp.le.s32.totalorder 1, %s15
      %p257 = scmp.lt.s32.totalorder %s15, 3
      %p258 = pnand %p256, %p257
      %p259 = pneg %p258
      // Predicated region
      $region45: #{tiniernet_forward.1} parent=5 // pred_check
        _
      $region46: #{tiniernet_forward.1} parent=5 // pred_check_branch
        %261 = sbr.rel (%p258) target = $region48
      $region47: #{tiniernet_forward.1} parent=5 // pred_region
        %s262 = ssub.s32 %s15, 1
        // Predicated region
        $region49: #{tiniernet_forward.1} parent=47 // pred_check
          %p263 = pneg %p62
        $region50: #{tiniernet_forward.1} parent=47 // pred_check_branch
          %265 = sbr.rel (%p263) target = $region52
        $region51: #{tiniernet_forward.1} parent=47 // pred_region
          %266 = dma.done [#allocation3], 16
        $region52: #{tiniernet_forward.1} parent=47 // pred_fallthru
          _
        // Predicated region
        $region53: #{tiniernet_forward.1} parent=47 // pred_check
          %p267 = pneg %p83
        $region54: #{tiniernet_forward.1} parent=47 // pred_check_branch
          %269 = sbr.rel (%p267) target = $region56
        $region55: #{tiniernet_forward.1} parent=47 // pred_region
          %270 = dma.done [#allocation5], 16
        $region56: #{tiniernet_forward.1} parent=47 // pred_fallthru
          _
        %271 = sfence
        %s272 = smul.u32 2, %s20
        %p273 = scmp.lt.s32.totalorder %s272, 3
        %s274 = scalar_select %p273, %s272, 3
        %s275 = smul.addr %s274, 2
        %s276 = smul.addr %s275, 8
        %s277 = scalar_lea.vmem %s0, %s276
        %p278 = pneg %p41
        %p279 = pneg %p38
        %p280 = pneg %p62
        %p281 = pneg %p59
        %p282 = pneg %p83
        %p283 = pneg %p80
        %p284 = pneg %p104
        %p285 = pneg %p101
        %p286 = pneg %p125
        %p287 = pneg %p122
        %p288 = pneg %p146
        %p289 = pneg %p143
        %p290 = pneg %p167
        %p291 = pneg %p164
        %p292 = pneg %p193
        %p293 = pneg %p190
        %p294 = scmp.lt.s32.totalorder %s20, 1
        %s295 = scalar_select %p294, %s20, 1
        %s296 = smul.addr %s295, 8
        %s297 = scalar_lea.vmem %s7, %s296
        %s298 = smul.u32 2, %s20
        %p299 = scmp.lt.s32.totalorder %s298, 3
        %s300 = scalar_select %p299, %s298, 3
        %s301 = smul.addr %s300, 2
        %s302 = smul.addr %s301, 8
        %s303 = scalar_lea.vmem %s0, %s302
        %s304 = smul.u32 2, %s20
        %p305 = scmp.lt.s32.totalorder %s20, 1
        %s306 = scalar_select %p305, %s20, 1
        %s307 = smul.addr %s306, 8
        %s308 = scalar_lea.vmem %s7, %s307
        %v309 = vlaneseq
        %v310 = vand.u32 %v309, 127
        %v311 = vld [vmem:[%s303] ss:$2 sm:$0xff]
        %s312 = scalar_lea.vmem %s303, 1
        %v313 = vld [vmem:[%s312] ss:$2 sm:$0xff]
        %v315 = vrot.slane %v313, 7
        %317 = vrot.lane.b32.xlu0 %v315, 1
        %v318 = vpop.permute.xlu0 %317
        %vm319 = vcmp.eq.s32.totalorder %v310, 0
        %v320 = vsel %vm319, 0.0, %v318
        %vm321 = vcmask 1040384
        %v322 = vsel %vm321, %v320, %v315
        %s323 = scalar_lea.vmem %s303, 16
        %v324 = vld [vmem:[%s323] ss:$2 sm:$0xff]
        %s325 = scalar_lea.vmem %s323, 1
        %v326 = vld [vmem:[%s325] ss:$2 sm:$0xff]
        %v328 = vrot.slane %v326, 7
        %330 = vrot.lane.b32.xlu0 %v328, 1
        %v331 = vpop.permute.xlu0 %330
        %v332 = vsel %vm319, 0.0, %v331
        %v333 = vsel %vm321, %v332, %v328
        %s334 = sld [smem:[#allocation2]]
        %v335 = vstv %s334
        %v336 = vmul.f32 %v335, %v322
        %s337 = sld [smem:[#allocation2 + $0x1]]
        %v338 = vstv %s337
        %v339 = vmul.f32 %v338, %v311
        %v340 = vadd.f32 %v336, %v339
        %s341 = sld [smem:[#allocation2 + $0x2]]
        %v342 = vstv %s341
        %v343 = vmul.f32 %v342, %v313
        %v344 = vadd.f32 %v340, %v343
        %s345 = sld [smem:[#allocation2 + $0x3]]
        %v346 = vstv %s345
        %v347 = vmul.f32 %v346, %v333
        %s348 = sld [smem:[#allocation2 + $0x4]]
        %v349 = vstv %s348
        %v350 = vmul.f32 %v349, %v324
        %v351 = vadd.f32 %v347, %v350
        %s352 = sld [smem:[#allocation2 + $0x5]]
        %v353 = vstv %s352
        %v354 = vmul.f32 %v353, %v326
        %v355 = vadd.f32 %v351, %v354
        %v356 = vadd.f32 %v344, %v355
        %s357 = sld [smem:[#allocation4]]
        %v358 = vstv %s357
        %v359 = vadd.f32 %v356, %v358
        %v360 = vmax.f32 %v359, 0.0
        %s361 = sld [smem:[#allocation2 + $0x6]]
        %v362 = vstv %s361
        %v363 = vmul.f32 %v362, %v322
        %s364 = sld [smem:[#allocation2 + $0x7]]
        %v365 = vstv %s364
        %v366 = vmul.f32 %v365, %v311
        %v367 = vadd.f32 %v363, %v366
        %s368 = sld [smem:[#allocation2 + $0x8]]
        %v369 = vstv %s368
        %v370 = vmul.f32 %v369, %v313
        %v371 = vadd.f32 %v367, %v370
        %s372 = sld [smem:[#allocation2 + $0x9]]
        %v373 = vstv %s372
        %v374 = vmul.f32 %v373, %v333
        %s375 = sld [smem:[#allocation2 + $0xa]]
        %v376 = vstv %s375
        %v377 = vmul.f32 %v376, %v324
        %v378 = vadd.f32 %v374, %v377
        %s379 = sld [smem:[#allocation2 + $0xb]]
        %v380 = vstv %s379
        %v381 = vmul.f32 %v380, %v326
        %v382 = vadd.f32 %v378, %v381
        %v383 = vadd.f32 %v371, %v382
        %s384 = sld [smem:[#allocation4 + $0x1]]
        %v385 = vstv %s384
        %v386 = vadd.f32 %v383, %v385
        %v387 = vmax.f32 %v386, 0.0
        %s388 = sld [smem:[#allocation2 + $0xc]]
        %v389 = vstv %s388
        %v390 = vmul.f32 %v389, %v322
        %s391 = sld [smem:[#allocation2 + $0xd]]
        %v392 = vstv %s391
        %v393 = vmul.f32 %v392, %v311
        %v394 = vadd.f32 %v390, %v393
        %s395 = sld [smem:[#allocation2 + $0xe]]
        %v396 = vstv %s395
        %v397 = vmul.f32 %v396, %v313
        %v398 = vadd.f32 %v394, %v397
        %s399 = sld [smem:[#allocation2 + $0xf]]
        %v400 = vstv %s399
        %v401 = vmul.f32 %v400, %v333
        %s402 = sld [smem:[#allocation2 + $0x10]]
        %v403 = vstv %s402
        %v404 = vmul.f32 %v403, %v324
        %v405 = vadd.f32 %v401, %v404
        %s406 = sld [smem:[#allocation2 + $0x11]]
        %v407 = vstv %s406
        %v408 = vmul.f32 %v407, %v326
        %v409 = vadd.f32 %v405, %v408
        %v410 = vadd.f32 %v398, %v409
        %s411 = sld [smem:[#allocation4 + $0x2]]
        %v412 = vstv %s411
        %v413 = vadd.f32 %v410, %v412
        %v414 = vmax.f32 %v413, 0.0
        %s415 = sld [smem:[#allocation2 + $0x12]]
        %v416 = vstv %s415
        %v417 = vmul.f32 %v416, %v322
        %s418 = sld [smem:[#allocation2 + $0x13]]
        %v419 = vstv %s418
        %v420 = vmul.f32 %v419, %v311
        %v421 = vadd.f32 %v417, %v420
        %s422 = sld [smem:[#allocation2 + $0x14]]
        %v423 = vstv %s422
        %v424 = vmul.f32 %v423, %v313
        %v425 = vadd.f32 %v421, %v424
        %s426 = sld [smem:[#allocation2 + $0x15]]
        %v427 = vstv %s426
        %v428 = vmul.f32 %v427, %v333
        %s429 = sld [smem:[#allocation2 + $0x16]]
        %v430 = vstv %s429
        %v431 = vmul.f32 %v430, %v324
        %v432 = vadd.f32 %v428, %v431
        %s433 = sld [smem:[#allocation2 + $0x17]]
        %v434 = vstv %s433
        %v435 = vmul.f32 %v434, %v326
        %v436 = vadd.f32 %v432, %v435
        %v437 = vadd.f32 %v425, %v436
        %s438 = sld [smem:[#allocation4 + $0x3]]
        %v439 = vstv %s438
        %v440 = vadd.f32 %v437, %v439
        %v441 = vmax.f32 %v440, 0.0
        %v443 = vrot.slane %v360, 1
        %v445 = vrot.slane %v360, 2
        %v447 = vrot.slane %v360, 3
        %v449 = vsel %vm321, %v360, %v443
        %vm450 = vcmask 1041408
        %v451 = vsel %vm450, %v449, %v445
        %vm452 = vcmask 1042432
        %v453 = vsel %vm452, %v451, %v447
        %v454 = vrot.slane %v360, 4
        %v456 = vsel %vm321, %v443, %v445
        %v457 = vsel %vm450, %v456, %v447
        %v458 = vsel %vm452, %v457, %v454
        %v460 = vrot.slane %v458, 3
        %462 = vrot.lane.b32.xlu0 %v460, 1
        %v463 = vpop.permute.xlu0 %462
        %v464 = vsel %vm319, 0.0, %v463
        %v465 = vrot.slane %v458, 7
        %v467 = vsel %vm321, %v464, %v465
        %v469 = vrot.slane %v387, 1
        %v471 = vrot.slane %v387, 2
        %v473 = vrot.slane %v387, 3
        %v475 = vsel %vm321, %v387, %v469
        %v476 = vsel %vm450, %v475, %v471
        %v477 = vsel %vm452, %v476, %v473
        %v478 = vrot.slane %v387, 4
        %v480 = vsel %vm321, %v469, %v471
        %v481 = vsel %vm450, %v480, %v473
        %v482 = vsel %vm452, %v481, %v478
        %v484 = vrot.slane %v482, 3
        %486 = vrot.lane.b32.xlu0 %v484, 1
        %v487 = vpop.permute.xlu0 %486
        %v488 = vsel %vm319, 0.0, %v487
        %v489 = vrot.slane %v482, 7
        %v491 = vsel %vm321, %v488, %v489
        %v493 = vrot.slane %v414, 1
        %v495 = vrot.slane %v414, 2
        %v497 = vrot.slane %v414, 3
        %v499 = vsel %vm321, %v414, %v493
        %v500 = vsel %vm450, %v499, %v495
        %v501 = vsel %vm452, %v500, %v497
        %v502 = vrot.slane %v414, 4
        %v504 = vsel %vm321, %v493, %v495
        %v505 = vsel %vm450, %v504, %v497
        %v506 = vsel %vm452, %v505, %v502
        %v508 = vrot.slane %v506, 3
        %510 = vrot.lane.b32.xlu0 %v508, 1
        %v511 = vpop.permute.xlu0 %510
        %v512 = vsel %vm319, 0.0, %v511
        %v513 = vrot.slane %v506, 7
        %v515 = vsel %vm321, %v512, %v513
        %v517 = vrot.slane %v441, 1
        %v519 = vrot.slane %v441, 2
        %v521 = vrot.slane %v441, 3
        %v523 = vsel %vm321, %v441, %v517
        %v524 = vsel %vm450, %v523, %v519
        %v525 = vsel %vm452, %v524, %v521
        %v526 = vrot.slane %v441, 4
        %v528 = vsel %vm321, %v517, %v519
        %v529 = vsel %vm450, %v528, %v521
        %v530 = vsel %vm452, %v529, %v526
        %v532 = vrot.slane %v530, 3
        %534 = vrot.lane.b32.xlu0 %v532, 1
        %v535 = vpop.permute.xlu0 %534
        %v536 = vsel %vm319, 0.0, %v535
        %v537 = vrot.slane %v530, 7
        %v539 = vsel %vm321, %v536, %v537
        %s540 = sld [smem:[#allocation2 + $0x18]]
        %v541 = vstv %s540
        %v542 = vmul.f32 %v541, %v467
        %s543 = sld [smem:[#allocation2 + $0x19]]
        %v544 = vstv %s543
        %v545 = vmul.f32 %v544, %v453
        %v546 = vadd.f32 %v542, %v545
        %s547 = sld [smem:[#allocation2 + $0x1a]]
        %v548 = vstv %s547
        %v549 = vmul.f32 %v548, %v458
        %v550 = vadd.f32 %v546, %v549
        %s551 = sld [smem:[#allocation2 + $0x1b]]
        %v552 = vstv %s551
        %v553 = vmul.f32 %v552, %v491
        %s554 = sld [smem:[#allocation2 + $0x1c]]
        %v555 = vstv %s554
        %v556 = vmul.f32 %v555, %v477
        %v557 = vadd.f32 %v553, %v556
        %s558 = sld [smem:[#allocation2 + $0x1d]]
        %v559 = vstv %s558
        %v560 = vmul.f32 %v559, %v482
        %v561 = vadd.f32 %v557, %v560
        %v562 = vadd.f32 %v550, %v561
        %s563 = sld [smem:[#allocation2 + $0x1e]]
        %v564 = vstv %s563
        %v565 = vmul.f32 %v564, %v515
        %s566 = sld [smem:[#allocation2 + $0x1f]]
        %v567 = vstv %s566
        %v568 = vmul.f32 %v567, %v501
        %v569 = vadd.f32 %v565, %v568
        %s570 = sld [smem:[#allocation2 + $0x20]]
        %v571 = vstv %s570
        %v572 = vmul.f32 %v571, %v506
        %v573 = vadd.f32 %v569, %v572
        %v574 = vadd.f32 %v562, %v573
        %s575 = sld [smem:[#allocation2 + $0x21]]
        %v576 = vstv %s575
        %v577 = vmul.f32 %v576, %v539
        %s578 = sld [smem:[#allocation2 + $0x22]]
        %v579 = vstv %s578
        %v580 = vmul.f32 %v579, %v525
        %v581 = vadd.f32 %v577, %v580
        %s582 = sld [smem:[#allocation2 + $0x23]]
        %v583 = vstv %s582
        %v584 = vmul.f32 %v583, %v530
        %v585 = vadd.f32 %v581, %v584
        %v586 = vadd.f32 %v574, %v585
        %s587 = sld [smem:[#allocation4 + $0x4]]
        %v588 = vstv %s587
        %v589 = vadd.f32 %v586, %v588
        %v590 = vmax.f32 %v589, 0.0
        %s591 = sld [smem:[#allocation2 + $0x24]]
        %v592 = vstv %s591
        %v593 = vmul.f32 %v592, %v467
        %s594 = sld [smem:[#allocation2 + $0x25]]
        %v595 = vstv %s594
        %v596 = vmul.f32 %v595, %v453
        %v597 = vadd.f32 %v593, %v596
        %s598 = sld [smem:[#allocation2 + $0x26]]
        %v599 = vstv %s598
        %v600 = vmul.f32 %v599, %v458
        %v601 = vadd.f32 %v597, %v600
        %s602 = sld [smem:[#allocation2 + $0x27]]
        %v603 = vstv %s602
        %v604 = vmul.f32 %v603, %v491
        %s605 = sld [smem:[#allocation2 + $0x28]]
        %v606 = vstv %s605
        %v607 = vmul.f32 %v606, %v477
        %v608 = vadd.f32 %v604, %v607
        %s609 = sld [smem:[#allocation2 + $0x29]]
        %v610 = vstv %s609
        %v611 = vmul.f32 %v610, %v482
        %v612 = vadd.f32 %v608, %v611
        %v613 = vadd.f32 %v601, %v612
        %s614 = sld [smem:[#allocation2 + $0x2a]]
        %v615 = vstv %s614
        %v616 = vmul.f32 %v615, %v515
        %s617 = sld [smem:[#allocation2 + $0x2b]]
        %v618 = vstv %s617
        %v619 = vmul.f32 %v618, %v501
        %v620 = vadd.f32 %v616, %v619
        %s621 = sld [smem:[#allocation2 + $0x2c]]
        %v622 = vstv %s621
        %v623 = vmul.f32 %v622, %v506
        %v624 = vadd.f32 %v620, %v623
        %v625 = vadd.f32 %v613, %v624
        %s626 = sld [smem:[#allocation2 + $0x2d]]
        %v627 = vstv %s626
        %v628 = vmul.f32 %v627, %v539
        %s629 = sld [smem:[#allocation2 + $0x2e]]
        %v630 = vstv %s629
        %v631 = vmul.f32 %v630, %v525
        %v632 = vadd.f32 %v628, %v631
        %s633 = sld [smem:[#allocation2 + $0x2f]]
        %v634 = vstv %s633
        %v635 = vmul.f32 %v634, %v530
        %v636 = vadd.f32 %v632, %v635
        %v637 = vadd.f32 %v625, %v636
        %s638 = sld [smem:[#allocation4 + $0x5]]
        %v639 = vstv %s638
        %v640 = vadd.f32 %v637, %v639
        %v641 = vmax.f32 %v640, 0.0
        %s642 = sld [smem:[#allocation2 + $0x30]]
        %v643 = vstv %s642
        %v644 = vmul.f32 %v643, %v467
        %s645 = sld [smem:[#allocation2 + $0x31]]
        %v646 = vstv %s645
        %v647 = vmul.f32 %v646, %v453
        %v648 = vadd.f32 %v644, %v647
        %s649 = sld [smem:[#allocation2 + $0x32]]
        %v650 = vstv %s649
        %v651 = vmul.f32 %v650, %v458
        %v652 = vadd.f32 %v648, %v651
        %s653 = sld [smem:[#allocation2 + $0x33]]
        %v654 = vstv %s653
        %v655 = vmul.f32 %v654, %v491
        %s656 = sld [smem:[#allocation2 + $0x34]]
        %v657 = vstv %s656
        %v658 = vmul.f32 %v657, %v477
        %v659 = vadd.f32 %v655, %v658
        %s660 = sld [smem:[#allocation2 + $0x35]]
        %v661 = vstv %s660
        %v662 = vmul.f32 %v661, %v482
        %v663 = vadd.f32 %v659, %v662
        %v664 = vadd.f32 %v652, %v663
        %s665 = sld [smem:[#allocation2 + $0x36]]
        %v666 = vstv %s665
        %v667 = vmul.f32 %v666, %v515
        %s668 = sld [smem:[#allocation2 + $0x37]]
        %v669 = vstv %s668
        %v670 = vmul.f32 %v669, %v501
        %v671 = vadd.f32 %v667, %v670
        %s672 = sld [smem:[#allocation2 + $0x38]]
        %v673 = vstv %s672
        %v674 = vmul.f32 %v673, %v506
        %v675 = vadd.f32 %v671, %v674
        %v676 = vadd.f32 %v664, %v675
        %s677 = sld [smem:[#allocation2 + $0x39]]
        %v678 = vstv %s677
        %v679 = vmul.f32 %v678, %v539
        %s680 = sld [smem:[#allocation2 + $0x3a]]
        %v681 = vstv %s680
        %v682 = vmul.f32 %v681, %v525
        %v683 = vadd.f32 %v679, %v682
        %s684 = sld [smem:[#allocation2 + $0x3b]]
        %v685 = vstv %s684
        %v686 = vmul.f32 %v685, %v530
        %v687 = vadd.f32 %v683, %v686
        %v688 = vadd.f32 %v676, %v687
        %s689 = sld [smem:[#allocation4 + $0x6]]
        %v690 = vstv %s689
        %v691 = vadd.f32 %v688, %v690
        %v692 = vmax.f32 %v691, 0.0
        %s693 = sld [smem:[#allocation2 + $0x3c]]
        %v694 = vstv %s693
        %v695 = vmul.f32 %v694, %v467
        %s696 = sld [smem:[#allocation2 + $0x3d]]
        %v697 = vstv %s696
        %v698 = vmul.f32 %v697, %v453
        %v699 = vadd.f32 %v695, %v698
        %s700 = sld [smem:[#allocation2 + $0x3e]]
        %v701 = vstv %s700
        %v702 = vmul.f32 %v701, %v458
        %v703 = vadd.f32 %v699, %v702
        %s704 = sld [smem:[#allocation2 + $0x3f]]
        %v705 = vstv %s704
        %v706 = vmul.f32 %v705, %v491
        %s707 = sld [smem:[#allocation2 + $0x40]]
        %v708 = vstv %s707
        %v709 = vmul.f32 %v708, %v477
        %v710 = vadd.f32 %v706, %v709
        %s711 = sld [smem:[#allocation2 + $0x41]]
        %v712 = vstv %s711
        %v713 = vmul.f32 %v712, %v482
        %v714 = vadd.f32 %v710, %v713
        %v715 = vadd.f32 %v703, %v714
        %s716 = sld [smem:[#allocation2 + $0x42]]
        %v717 = vstv %s716
        %v718 = vmul.f32 %v717, %v515
        %s719 = sld [smem:[#allocation2 + $0x43]]
        %v720 = vstv %s719
        %v721 = vmul.f32 %v720, %v501
        %v722 = vadd.f32 %v718, %v721
        %s723 = sld [smem:[#allocation2 + $0x44]]
        %v724 = vstv %s723
        %v725 = vmul.f32 %v724, %v506
        %v726 = vadd.f32 %v722, %v725
        %v727 = vadd.f32 %v715, %v726
        %s728 = sld [smem:[#allocation2 + $0x45]]
        %v729 = vstv %s728
        %v730 = vmul.f32 %v729, %v539
        %s731 = sld [smem:[#allocation2 + $0x46]]
        %v732 = vstv %s731
        %v733 = vmul.f32 %v732, %v525
        %v734 = vadd.f32 %v730, %v733
        %s735 = sld [smem:[#allocation2 + $0x47]]
        %v736 = vstv %s735
        %v737 = vmul.f32 %v736, %v530
        %v738 = vadd.f32 %v734, %v737
        %v739 = vadd.f32 %v727, %v738
        %s740 = sld [smem:[#allocation4 + $0x7]]
        %v741 = vstv %s740
        %v742 = vadd.f32 %v739, %v741
        %v743 = vmax.f32 %v742, 0.0
        %v745 = vrot.slane %v590, 1
        %v747 = vsel %vm321, %v590, %v745
        %v748 = vrot.slane %v590, 2
        %v750 = vsel %vm321, %v745, %v748
        %v752 = vrot.slane %v750, 1
        %754 = vrot.lane.b32.xlu0 %v752, 1
        %v755 = vpop.permute.xlu0 %754
        %v756 = vsel %vm319, 0.0, %v755
        %v757 = vrot.slane %v750, 7
        %v759 = vsel %vm321, %v756, %v757
        %v761 = vrot.slane %v641, 1
        %v763 = vsel %vm321, %v641, %v761
        %v764 = vrot.slane %v641, 2
        %v766 = vsel %vm321, %v761, %v764
        %v768 = vrot.slane %v766, 1
        %770 = vrot.lane.b32.xlu0 %v768, 1
        %v771 = vpop.permute.xlu0 %770
        %v772 = vsel %vm319, 0.0, %v771
        %v773 = vrot.slane %v766, 7
        %v775 = vsel %vm321, %v772, %v773
        %v777 = vrot.slane %v692, 1
        %v779 = vsel %vm321, %v692, %v777
        %v780 = vrot.slane %v692, 2
        %v782 = vsel %vm321, %v777, %v780
        %v784 = vrot.slane %v782, 1
        %786 = vrot.lane.b32.xlu0 %v784, 1
        %v787 = vpop.permute.xlu0 %786
        %v788 = vsel %vm319, 0.0, %v787
        %v789 = vrot.slane %v782, 7
        %v791 = vsel %vm321, %v788, %v789
        %v793 = vrot.slane %v743, 1
        %v795 = vsel %vm321, %v743, %v793
        %v796 = vrot.slane %v743, 2
        %v798 = vsel %vm321, %v793, %v796
        %v800 = vrot.slane %v798, 1
        %802 = vrot.lane.b32.xlu0 %v800, 1
        %v803 = vpop.permute.xlu0 %802
        %v804 = vsel %vm319, 0.0, %v803
        %v805 = vrot.slane %v798, 7
        %v807 = vsel %vm321, %v804, %v805
        %s808 = sld [smem:[#allocation2 + $0x48]]
        %v809 = vstv %s808
        %v810 = vmul.f32 %v809, %v759
        %s811 = sld [smem:[#allocation2 + $0x49]]
        %v812 = vstv %s811
        %v813 = vmul.f32 %v812, %v747
        %v814 = vadd.f32 %v810, %v813
        %s815 = sld [smem:[#allocation2 + $0x4a]]
        %v816 = vstv %s815
        %v817 = vmul.f32 %v816, %v750
        %v818 = vadd.f32 %v814, %v817
        %s819 = sld [smem:[#allocation2 + $0x4b]]
        %v820 = vstv %s819
        %v821 = vmul.f32 %v820, %v775
        %s822 = sld [smem:[#allocation2 + $0x4c]]
        %v823 = vstv %s822
        %v824 = vmul.f32 %v823, %v763
        %v825 = vadd.f32 %v821, %v824
        %s826 = sld [smem:[#allocation2 + $0x4d]]
        %v827 = vstv %s826
        %v828 = vmul.f32 %v827, %v766
        %v829 = vadd.f32 %v825, %v828
        %v830 = vadd.f32 %v818, %v829
        %s831 = sld [smem:[#allocation2 + $0x4e]]
        %v832 = vstv %s831
        %v833 = vmul.f32 %v832, %v791
        %s834 = sld [smem:[#allocation2 + $0x4f]]
        %v835 = vstv %s834
        %v836 = vmul.f32 %v835, %v779
        %v837 = vadd.f32 %v833, %v836
        %s838 = sld [smem:[#allocation2 + $0x50]]
        %v839 = vstv %s838
        %v840 = vmul.f32 %v839, %v782
        %v841 = vadd.f32 %v837, %v840
        %v842 = vadd.f32 %v830, %v841
        %s843 = sld [smem:[#allocation2 + $0x51]]
        %v844 = vstv %s843
        %v845 = vmul.f32 %v844, %v807
        %s846 = sld [smem:[#allocation2 + $0x52]]
        %v847 = vstv %s846
        %v848 = vmul.f32 %v847, %v795
        %v849 = vadd.f32 %v845, %v848
        %s850 = sld [smem:[#allocation2 + $0x53]]
        %v851 = vstv %s850
        %v852 = vmul.f32 %v851, %v798
        %v853 = vadd.f32 %v849, %v852
        %v854 = vadd.f32 %v842, %v853
        %s855 = sld [smem:[#allocation4 + $0x8]]
        %v856 = vstv %s855
        %v857 = vadd.f32 %v854, %v856
        %v858 = vmax.f32 %v857, 0.0
        %s859 = sld [smem:[#allocation2 + $0x54]]
        %v860 = vstv %s859
        %v861 = vmul.f32 %v860, %v759
        %s862 = sld [smem:[#allocation2 + $0x55]]
        %v863 = vstv %s862
        %v864 = vmul.f32 %v863, %v747
        %v865 = vadd.f32 %v861, %v864
        %s866 = sld [smem:[#allocation2 + $0x56]]
        %v867 = vstv %s866
        %v868 = vmul.f32 %v867, %v750
        %v869 = vadd.f32 %v865, %v868
        %s870 = sld [smem:[#allocation2 + $0x57]]
        %v871 = vstv %s870
        %v872 = vmul.f32 %v871, %v775
        %s873 = sld [smem:[#allocation2 + $0x58]]
        %v874 = vstv %s873
        %v875 = vmul.f32 %v874, %v763
        %v876 = vadd.f32 %v872, %v875
        %s877 = sld [smem:[#allocation2 + $0x59]]
        %v878 = vstv %s877
        %v879 = vmul.f32 %v878, %v766
        %v880 = vadd.f32 %v876, %v879
        %v881 = vadd.f32 %v869, %v880
        %s882 = sld [smem:[#allocation2 + $0x5a]]
        %v883 = vstv %s882
        %v884 = vmul.f32 %v883, %v791
        %s885 = sld [smem:[#allocation2 + $0x5b]]
        %v886 = vstv %s885
        %v887 = vmul.f32 %v886, %v779
        %v888 = vadd.f32 %v884, %v887
        %s889 = sld [smem:[#allocation2 + $0x5c]]
        %v890 = vstv %s889
        %v891 = vmul.f32 %v890, %v782
        %v892 = vadd.f32 %v888, %v891
        %v893 = vadd.f32 %v881, %v892
        %s894 = sld [smem:[#allocation2 + $0x5d]]
        %v895 = vstv %s894
        %v896 = vmul.f32 %v895, %v807
        %s897 = sld [smem:[#allocation2 + $0x5e]]
        %v898 = vstv %s897
        %v899 = vmul.f32 %v898, %v795
        %v900 = vadd.f32 %v896, %v899
        %s901 = sld [smem:[#allocation2 + $0x5f]]
        %v902 = vstv %s901
        %v903 = vmul.f32 %v902, %v798
        %v904 = vadd.f32 %v900, %v903
        %v905 = vadd.f32 %v893, %v904
        %s906 = sld [smem:[#allocation4 + $0x9]]
        %v907 = vstv %s906
        %v908 = vadd.f32 %v905, %v907
        %v909 = vmax.f32 %v908, 0.0
        %v911 = vrot.slane %v858, 1
        %913 = vrot.lane.b32.xlu0 %v911, 1
        %v914 = vpop.permute.xlu0 %913
        %v915 = vsel %vm319, 0.0, %v914
        %v917 = vrot.slane %v909, 1
        %919 = vrot.lane.b32.xlu0 %v917, 1
        %v920 = vpop.permute.xlu0 %919
        %v921 = vsel %vm319, 0.0, %v920
        %s922 = sld [smem:[#allocation2 + $0x60]]
        %v923 = vstv %s922
        %v924 = vmul.f32 %v923, %v915
        %s925 = sld [smem:[#allocation2 + $0x61]]
        %v926 = vstv %s925
        %v927 = vmul.f32 %v926, %v858
        %v928 = vadd.f32 %v924, %v927
        %s929 = sld [smem:[#allocation2 + $0x62]]
        %v930 = vstv %s929
        %v931 = vmul.f32 %v930, %v858
        %v933 = vrot.slane %v931, 1
        %v935 = vadd.f32 %v928, %v933
        %s936 = sld [smem:[#allocation2 + $0x63]]
        %v937 = vstv %s936
        %v938 = vmul.f32 %v937, %v921
        %s939 = sld [smem:[#allocation2 + $0x64]]
        %v940 = vstv %s939
        %v941 = vmul.f32 %v940, %v909
        %v942 = vadd.f32 %v938, %v941
        %s943 = sld [smem:[#allocation2 + $0x65]]
        %v944 = vstv %s943
        %v945 = vmul.f32 %v944, %v909
        %v947 = vrot.slane %v945, 1
        %v949 = vadd.f32 %v942, %v947
        %v950 = vadd.f32 %v935, %v949
        %s951 = sld [smem:[#allocation4 + $0xa]]
        %v952 = vstv %s951
        %v953 = vadd.f32 %v950, %v952
        %v954 = vmax.f32 %v953, 0.0
        %s955 = sld [smem:[#allocation2 + $0x66]]
        %v956 = vstv %s955
        %v957 = vmul.f32 %v956, %v915
        %s958 = sld [smem:[#allocation2 + $0x67]]
        %v959 = vstv %s958
        %v960 = vmul.f32 %v959, %v858
        %v961 = vadd.f32 %v957, %v960
        %s962 = sld [smem:[#allocation2 + $0x68]]
        %v963 = vstv %s962
        %v964 = vmul.f32 %v963, %v858
        %v966 = vrot.slane %v964, 1
        %v968 = vadd.f32 %v961, %v966
        %s969 = sld [smem:[#allocation2 + $0x69]]
        %v970 = vstv %s969
        %v971 = vmul.f32 %v970, %v921
        %s972 = sld [smem:[#allocation2 + $0x6a]]
        %v973 = vstv %s972
        %v974 = vmul.f32 %v973, %v909
        %v975 = vadd.f32 %v971, %v974
        %s976 = sld [smem:[#allocation2 + $0x6b]]
        %v977 = vstv %s976
        %v978 = vmul.f32 %v977, %v909
        %v980 = vrot.slane %v978, 1
        %v982 = vadd.f32 %v975, %v980
        %v983 = vadd.f32 %v968, %v982
        %s984 = sld [smem:[#allocation4 + $0xb]]
        %v985 = vstv %s984
        %v986 = vadd.f32 %v983, %v985
        %v987 = vmax.f32 %v986, 0.0
        %988 = vrot.lane.b32.xlu0 %v954, 1
        %v989 = vpop.permute.xlu0 %988
        %v990 = vsel %vm319, 0.0, %v989
        %991 = vrot.lane.b32.xlu0 %v954, 127
        %v992 = vpop.permute.xlu0 %991
        %s993 = sld [smem:[#allocation2 + $0x6c]]
        %v994 = vstv %s993
        %v995 = vmul.f32 %v994, %v990
        %s996 = sld [smem:[#allocation2 + $0x6d]]
        %v997 = vstv %s996
        %v998 = vmul.f32 %v997, %v954
        %v999 = vadd.f32 %v995, %v998
        %s1000 = sld [smem:[#allocation2 + $0x6e]]
        %v1001 = vstv %s1000
        %v1002 = vmul.f32 %v1001, %v992
        %v1003 = vadd.f32 %v999, %v1002
        %1004 = vrot.lane.b32.xlu0 %v987, 1
        %v1005 = vpop.permute.xlu0 %1004
        %v1006 = vsel %vm319, 0.0, %v1005
        %1007 = vrot.lane.b32.xlu0 %v987, 127
        %v1008 = vpop.permute.xlu0 %1007
        %s1009 = sld [smem:[#allocation2 + $0x6f]]
        %v1010 = vstv %s1009
        %v1011 = vmul.f32 %v1010, %v1006
        %s1012 = sld [smem:[#allocation2 + $0x70]]
        %v1013 = vstv %s1012
        %v1014 = vmul.f32 %v1013, %v987
        %v1015 = vadd.f32 %v1011, %v1014
        %s1016 = sld [smem:[#allocation2 + $0x71]]
        %v1017 = vstv %s1016
        %v1018 = vmul.f32 %v1017, %v1008
        %v1019 = vadd.f32 %v1015, %v1018
        %v1020 = vadd.f32 %v1003, %v1019
        %s1021 = sld [smem:[#allocation4 + $0xc]]
        %v1022 = vstv %s1021
        %v1023 = vadd.f32 %v1020, %v1022
        %v1024 = vmax.f32 %v1023, 0.0
        %vm1025 = vcmp.lt.s32.totalorder %v310, 2
        %1026 = vrot.lane.b32.xlu0 %v1024, 2
        %v1027 = vpop.permute.xlu0 %1026
        %v1028 = vsel %vm1025, 0.0, %v1027
        %1029 = vrot.lane.b32.xlu0 %v1024, 126
        %v1030 = vpop.permute.xlu0 %1029
        %s1031 = sld [smem:[#allocation2 + $0x72]]
        %v1032 = vstv %s1031
        %v1033 = vmul.f32 %v1032, %v1028
        %s1034 = sld [smem:[#allocation2 + $0x73]]
        %v1035 = vstv %s1034
        %v1036 = vmul.f32 %v1035, %v1024
        %v1037 = vadd.f32 %v1033, %v1036
        %s1038 = sld [smem:[#allocation2 + $0x74]]
        %v1039 = vstv %s1038
        %v1040 = vmul.f32 %v1039, %v1030
        %v1041 = vadd.f32 %v1037, %v1040
        %s1042 = sld [smem:[#allocation4 + $0xd]]
        %v1043 = vstv %s1042
        %v1044 = vadd.f32 %v1041, %v1043
        %v1045 = vmax.f32 %v1044, 0.0
        %v1046 = vld [vmem:[%s3] sm:$0xff]
        %v1047 = vld [vmem:[%s3 + $0x8] sm:$0xff]
        %v1048 = vld [vmem:[%s3 + $0x10] sm:$0xff]
        %v1049 = vld [vmem:[%s3 + $0x18] sm:$0xff]
        %v1050 = vld [vmem:[%s3 + $0x20] sm:$0xff]
        %v1051 = vld [vmem:[%s3 + $0x28] sm:$0xff]
        %v1052 = vld [vmem:[%s3 + $0x30] sm:$0xff]
        %v1053 = vld [vmem:[%s3 + $0x38] sm:$0xff]
        %v1054 = vld [vmem:[%s3 + $0x40] sm:$0xff]
        %v1055 = vld [vmem:[%s3 + $0x48] sm:$0xff]
        %v1056 = vld [vmem:[%s3 + $0x50] sm:$0xff]
        %v1057 = vld [vmem:[%s3 + $0x58] sm:$0xff]
        %v1058 = vld [vmem:[%s3 + $0x60] sm:$0xff]
        %v1059 = vld [vmem:[%s3 + $0x68] sm:$0xff]
        %v1060 = vld [vmem:[%s3 + $0x70] sm:$0xff]
        %v1061 = vld [vmem:[%s3 + $0x78] sm:$0xff]
        %v1062 = vld [vmem:[%s6] sm:$0x1]
        %1063 = vmatprep.subr.mxu0 0.0
        %1064 = vmatpush1.msra.mxu0 %v1046
        %1065 = vmatprep.subr.mxu0 0.0
        %1066 = vmatpush1.msra.mxu0 %v1047
        %1067 = vmatprep.subr.mxu0 0.0
        %1068 = vmatpush1.msra.mxu0 %v1048
        %1069 = vmatprep.subr.mxu0 0.0
        %1070 = vmatpush1.msra.mxu0 %v1049
        %1071 = vmatprep.subr.mxu0 0.0
        %1072 = vmatpush1.msra.mxu0 %v1050
        %1073 = vmatprep.subr.mxu0 0.0
        %1074 = vmatpush1.msra.mxu0 %v1051
        %1075 = vmatprep.subr.mxu0 0.0
        %1076 = vmatpush1.msra.mxu0 %v1052
        %1077 = vmatprep.subr.mxu0 0.0
        %1078 = vmatpush1.msra.mxu0 %v1053
        %1079 = vmatprep.subr.mxu0 0.0
        %1080 = vmatpush1.msra.mxu0 %v1054
        %1081 = vmatprep.subr.mxu0 0.0
        %1082 = vmatpush1.msra.mxu0 %v1055
        %1083 = vmatprep.subr.mxu0 0.0
        %1084 = vmatpush1.msra.mxu0 %v1056
        %1085 = vmatprep.subr.mxu0 0.0
        %1086 = vmatpush1.msra.mxu0 %v1057
        %1087 = vmatprep.subr.mxu0 0.0
        %1088 = vmatpush1.msra.mxu0 %v1058
        %1089 = vmatprep.subr.mxu0 0.0
        %1090 = vmatpush1.msra.mxu0 %v1059
        %1091 = vmatprep.subr.mxu0 0.0
        %1092 = vmatpush1.msra.mxu0 %v1060
        %1093 = vmatprep.subr.mxu0 0.0
        %1094 = vmatpush1.msra.mxu0 %v1061
        %1095 = vmatprep.subr.mxu0 0.0
        %1096 = vmatpush1.msra.mxu0 0.0
        %1097 = vmatprep.subr.mxu0 0.0
        %1098 = vmatpush1.msra.mxu0 0.0
        %1099 = vmatprep.subr.mxu0 0.0
        %1100 = vmatpush1.msra.mxu0 0.0
        %1101 = vmatprep.subr.mxu0 0.0
        %1102 = vmatpush1.msra.mxu0 0.0
        %1103 = vmatprep.subr.mxu0 0.0
        %1104 = vmatpush1.msra.mxu0 0.0
        %1105 = vmatprep.subr.mxu0 0.0
        %1106 = vmatpush1.msra.mxu0 0.0
        %1107 = vmatprep.subr.mxu0 0.0
        %1108 = vmatpush1.msra.mxu0 0.0
        %1109 = vmatprep.subr.mxu0 0.0
        %1110 = vmatpush1.msra.mxu0 0.0
        %1111 = vmatprep.subr.mxu0 0.0
        %1112 = vmatpush1.msra.mxu0 0.0
        %1113 = vmatprep.subr.mxu0 0.0
        %1114 = vmatpush1.msra.mxu0 0.0
        %1115 = vmatprep.subr.mxu0 0.0
        %1116 = vmatpush1.msra.mxu0 0.0
        %1117 = vmatprep.subr.mxu0 0.0
        %1118 = vmatpush1.msra.mxu0 0.0
        %1119 = vmatprep.subr.mxu0 0.0
        %1120 = vmatpush1.msra.mxu0 0.0
        %1121 = vmatprep.subr.mxu0 0.0
        %1122 = vmatpush1.msra.mxu0 0.0
        %1123 = vmatprep.subr.mxu0 0.0
        %1124 = vmatpush1.msra.mxu0 0.0
        %1125 = vmatprep.subr.mxu0 0.0
        %1126 = vmatpush1.msra.mxu0 0.0
        %1127 = vmatprep.mubr.f32.mxu0 0.0
        %1128 = vmatmul.mubr.f32.gmra.mrb[0].mxu0 %v1045
        %v1129 = vpop.f32.mrb[0].mxu0
        %v1130 = vadd.f32 %v1062, %v1129
        %v1131 = vpop.f32.mrb[0].mxu0
        %1132 = vdwg.mxu0
        %v1133 = vmax.f32 %v1130, 0.0
        %v1134 = vld [vmem:[%s4] sm:$0xff]
        %v1135 = vld [vmem:[%s6 + $0x1] sm:$0x1]
        %vm1136 = vcmask 64512
        %v1138 = vsel %vm1136, %v1133, 0
        %1140 = vmatprep.subr.mxu0 0.0
        %1141 = vmatpush1.msra.mxu0 %v1134
        %1142 = vmatprep.subr.mxu0 0.0
        %1143 = vmatpush1.msra.mxu0 0.0
        %1144 = vmatprep.subr.mxu0 0.0
        %1145 = vmatpush1.msra.mxu0 0.0
        %1146 = vmatprep.subr.mxu0 0.0
        %1147 = vmatpush1.msra.mxu0 0.0
        %1148 = vmatprep.subr.mxu0 0.0
        %1149 = vmatpush1.msra.mxu0 0.0
        %1150 = vmatprep.subr.mxu0 0.0
        %1151 = vmatpush1.msra.mxu0 0.0
        %1152 = vmatprep.subr.mxu0 0.0
        %1153 = vmatpush1.msra.mxu0 0.0
        %1154 = vmatprep.subr.mxu0 0.0
        %1155 = vmatpush1.msra.mxu0 0.0
        %1156 = vmatprep.subr.mxu0 0.0
        %1157 = vmatpush1.msra.mxu0 0.0
        %1158 = vmatprep.subr.mxu0 0.0
        %1159 = vmatpush1.msra.mxu0 0.0
        %1160 = vmatprep.subr.mxu0 0.0
        %1161 = vmatpush1.msra.mxu0 0.0
        %1162 = vmatprep.subr.mxu0 0.0
        %1163 = vmatpush1.msra.mxu0 0.0
        %1164 = vmatprep.subr.mxu0 0.0
        %1165 = vmatpush1.msra.mxu0 0.0
        %1166 = vmatprep.subr.mxu0 0.0
        %1167 = vmatpush1.msra.mxu0 0.0
        %1168 = vmatprep.subr.mxu0 0.0
        %1169 = vmatpush1.msra.mxu0 0.0
        %1170 = vmatprep.subr.mxu0 0.0
        %1171 = vmatpush1.msra.mxu0 0.0
        %1172 = vmatprep.subr.mxu0 0.0
        %1173 = vmatpush1.msra.mxu0 0.0
        %1174 = vmatprep.subr.mxu0 0.0
        %1175 = vmatpush1.msra.mxu0 0.0
        %1176 = vmatprep.subr.mxu0 0.0
        %1177 = vmatpush1.msra.mxu0 0.0
        %1178 = vmatprep.subr.mxu0 0.0
        %1179 = vmatpush1.msra.mxu0 0.0
        %1180 = vmatprep.subr.mxu0 0.0
        %1181 = vmatpush1.msra.mxu0 0.0
        %1182 = vmatprep.subr.mxu0 0.0
        %1183 = vmatpush1.msra.mxu0 0.0
        %1184 = vmatprep.subr.mxu0 0.0
        %1185 = vmatpush1.msra.mxu0 0.0
        %1186 = vmatprep.subr.mxu0 0.0
        %1187 = vmatpush1.msra.mxu0 0.0
        %1188 = vmatprep.subr.mxu0 0.0
        %1189 = vmatpush1.msra.mxu0 0.0
        %1190 = vmatprep.subr.mxu0 0.0
        %1191 = vmatpush1.msra.mxu0 0.0
        %1192 = vmatprep.subr.mxu0 0.0
        %1193 = vmatpush1.msra.mxu0 0.0
        %1194 = vmatprep.subr.mxu0 0.0
        %1195 = vmatpush1.msra.mxu0 0.0
        %1196 = vmatprep.subr.mxu0 0.0
        %1197 = vmatpush1.msra.mxu0 0.0
        %1198 = vmatprep.subr.mxu0 0.0
        %1199 = vmatpush1.msra.mxu0 0.0
        %1200 = vmatprep.subr.mxu0 0.0
        %1201 = vmatpush1.msra.mxu0 0.0
        %1202 = vmatprep.subr.mxu0 0.0
        %1203 = vmatpush1.msra.mxu0 0.0
        %1204 = vmatprep.mubr.f32.mxu0 0.0
        %1205 = vmatmul.mubr.f32.gmra.mrb[0].mxu0 %v1138
        %v1206 = vpop.f32.mrb[0].mxu0
        %v1207 = vadd.f32 %v1135, %v1206
        %v1208 = vpop.f32.mrb[0].mxu0
        %1209 = vdwg.mxu0
        %v1210 = vmax.f32 %v1207, 0.0
        %v1211 = vld [vmem:[%s5] sm:$0xff]
        %v1213 = vsel %vm1136, %v1210, 0
        %1215 = vmatprep.subr.mxu0 0.0
        %1216 = vmatpush1.msra.mxu0 %v1211
        %1217 = vmatprep.subr.mxu0 0.0
        %1218 = vmatpush1.msra.mxu0 0.0
        %1219 = vmatprep.subr.mxu0 0.0
        %1220 = vmatpush1.msra.mxu0 0.0
        %1221 = vmatprep.subr.mxu0 0.0
        %1222 = vmatpush1.msra.mxu0 0.0
        %1223 = vmatprep.subr.mxu0 0.0
        %1224 = vmatpush1.msra.mxu0 0.0
        %1225 = vmatprep.subr.mxu0 0.0
        %1226 = vmatpush1.msra.mxu0 0.0
        %1227 = vmatprep.subr.mxu0 0.0
        %1228 = vmatpush1.msra.mxu0 0.0
        %1229 = vmatprep.subr.mxu0 0.0
        %1230 = vmatpush1.msra.mxu0 0.0
        %1231 = vmatprep.subr.mxu0 0.0
        %1232 = vmatpush1.msra.mxu0 0.0
        %1233 = vmatprep.subr.mxu0 0.0
        %1234 = vmatpush1.msra.mxu0 0.0
        %1235 = vmatprep.subr.mxu0 0.0
        %1236 = vmatpush1.msra.mxu0 0.0
        %1237 = vmatprep.subr.mxu0 0.0
        %1238 = vmatpush1.msra.mxu0 0.0
        %1239 = vmatprep.subr.mxu0 0.0
        %1240 = vmatpush1.msra.mxu0 0.0
        %1241 = vmatprep.subr.mxu0 0.0
        %1242 = vmatpush1.msra.mxu0 0.0
        %1243 = vmatprep.subr.mxu0 0.0
        %1244 = vmatpush1.msra.mxu0 0.0
        %1245 = vmatprep.subr.mxu0 0.0
        %1246 = vmatpush1.msra.mxu0 0.0
        %1247 = vmatprep.subr.mxu0 0.0
        %1248 = vmatpush1.msra.mxu0 0.0
        %1249 = vmatprep.subr.mxu0 0.0
        %1250 = vmatpush1.msra.mxu0 0.0
        %1251 = vmatprep.subr.mxu0 0.0
        %1252 = vmatpush1.msra.mxu0 0.0
        %1253 = vmatprep.subr.mxu0 0.0
        %1254 = vmatpush1.msra.mxu0 0.0
        %1255 = vmatprep.subr.mxu0 0.0
        %1256 = vmatpush1.msra.mxu0 0.0
        %1257 = vmatprep.subr.mxu0 0.0
        %1258 = vmatpush1.msra.mxu0 0.0
        %1259 = vmatprep.subr.mxu0 0.0
        %1260 = vmatpush1.msra.mxu0 0.0
        %1261 = vmatprep.subr.mxu0 0.0
        %1262 = vmatpush1.msra.mxu0 0.0
        %1263 = vmatprep.subr.mxu0 0.0
        %1264 = vmatpush1.msra.mxu0 0.0
        %1265 = vmatprep.subr.mxu0 0.0
        %1266 = vmatpush1.msra.mxu0 0.0
        %1267 = vmatprep.subr.mxu0 0.0
        %1268 = vmatpush1.msra.mxu0 0.0
        %1269 = vmatprep.subr.mxu0 0.0
        %1270 = vmatpush1.msra.mxu0 0.0
        %1271 = vmatprep.subr.mxu0 0.0
        %1272 = vmatpush1.msra.mxu0 0.0
        %1273 = vmatprep.subr.mxu0 0.0
        %1274 = vmatpush1.msra.mxu0 0.0
        %1275 = vmatprep.subr.mxu0 0.0
        %1276 = vmatpush1.msra.mxu0 0.0
        %1277 = vmatprep.subr.mxu0 0.0
        %1278 = vmatpush1.msra.mxu0 0.0
        %1279 = vmatprep.mubr.f32.mxu0 0.0
        %1280 = vmatmul.mubr.f32.gmra.mrb[0].mxu0 %v1213
        %v1281 = vpop.f32.mrb[0].mxu0
        %v1282 = vadd.f32 0.0, %v1281
        %v1283 = vpop.f32.mrb[0].mxu0
        %1284 = vdwg.mxu0
        %s1286 = vtos %v1282
        %v1287 = vstv %s1286
        %1289 = vst [vmem:[%s308] sm:$0xff] %v1287
        %p1290 = scmp.lt.s32.totalorder %s20, 1
        %s1291 = scalar_select %p1290, %s20, 1
        %s1292 = smul.addr %s1291, 8
        %s1293 = scalar_lea.vmem %s7, %s1292
        // Predicated region
        $region57: #{tiniernet_forward.1} parent=47 // pred_check
          %p1294 = pneg %p190
        $region58: #{tiniernet_forward.1} parent=47 // pred_check_branch
          %1296 = sbr.rel (%p1294) target = $region60
        $region59: #{tiniernet_forward.1} parent=47 // pred_region
          _
        $region60: #{tiniernet_forward.1} parent=47 // pred_fallthru
          _
      $region48: #{tiniernet_forward.1} parent=5 // pred_fallthru
        _
      %p1297 = scmp.le.s32.totalorder 2, %s15
      // Predicated region
      $region61: #{tiniernet_forward.1} parent=5 // pred_check
        %p1298 = pneg %p1297
      $region62: #{tiniernet_forward.1} parent=5 // pred_check_branch
        %1300 = sbr.rel (%p1298) target = $region64
      $region63: #{tiniernet_forward.1} parent=5 // pred_region
        %s1301 = ssub.s32 %s15, 2
        // Predicated region
        $region65: #{tiniernet_forward.1} parent=63 // pred_check
          %p1302 = pneg %p196
        $region66: #{tiniernet_forward.1} parent=63 // pred_check_branch
          %1304 = sbr.rel (%p1302) target = $region68
        $region67: #{tiniernet_forward.1} parent=63 // pred_region
          %p1305 = scmp.lt.s32.totalorder %s21, 1
          %s1306 = scalar_select %p1305, %s21, 1
          %s1307 = smul.addr %s1306, 8
          %s1308 = scalar_lea.vmem %s7, %s1307
        $region68: #{tiniernet_forward.1} parent=63 // pred_fallthru
          _
      $region64: #{tiniernet_forward.1} parent=5 // pred_fallthru
        _
    $region6: #{tiniernet_forward.1} parent=1 // loop_footer
      %s19 = sadd.s32 1, %s15
    $region7: #{tiniernet_forward.1} parent=1 // loop_footer_branch
      %14 = sbr.rel target = $region3
    $region8: #{tiniernet_forward.1} parent=1 // loop_exit
      _
    %1309 = vsyncpa [#allocation3], 1
    %s1310 = scalar_lea.sflag [#allocation3], 1
    %1311 = vsyncpa %s1310, 1
    %1312 = vsyncpa [#allocation5], 1

</llo_original>
